<compile_context>
chip_gen: v7x
topology: tpu7x:2x2x1
jax: 0.10.0
libtpu: 0.0.40
codegen_flags: <defaults>
</compile_context>

<pallas_src>
import functools

import jax
import jax.numpy as jnp
from jax.experimental import pallas as pl
from jax.experimental.pallas import tpu as pltpu


# --------------------------------------------------------------------------------------
# Fully fused forward: 1x1 conv -> 3x3 depthwise -> channel attention -> 1x1 conv
# --------------------------------------------------------------------------------------
def _fused_attention(x3, qkv_w, dw_w9, tap_mask, t_row, head_bias, proj_w, *, H, W):
    """x3: (B, C, HW) channels-first. Returns (B, C, HW)."""
    B, C, HW = x3.shape
    C3 = 3 * C

    def kernel(x_ref, wqkv_ref, dw_ref, mask_ref, t_ref, bias_ref, wproj_ref, o_ref):
        x = x_ref[0].astype(jnp.float32)                                   # (C, HW)

        # ---- 1x1 conv: qkv = W_qkv @ x (MXU) ------------------------------------------
        qkv = jnp.dot(wqkv_ref[...].astype(jnp.float32), x,
                      preferred_element_type=jnp.float32)                  # (3C, HW)

        # ---- 3x3 depthwise conv (padding=1) on the flat HW (lane) axis -----------------
        acc = jnp.zeros((C3, HW), dtype=jnp.float32)
        t = 0
        for dy in (-1, 0, 1):
            for dx in (-1, 0, 1):
                d = dy * W + dx
                shifted = qkv if d == 0 else pltpu.roll(qkv, (-d) % HW, 1)
                # mask_ref[t]: (1, HW) border mask; dw_ref[t]: (3C, 1) per-channel weight.
                acc = acc + shifted * mask_ref[t] * dw_ref[t]
                t += 1

        # ---- channel attention, all heads batched --------------------------------------
        q = acc[:C]                                                        # (C, HW)
        k = acc[C:2 * C]
        v = acc[2 * C:]

        eps2 = 1e-24                                                       # F.normalize eps^2
        rq = jax.lax.rsqrt(jnp.maximum(jnp.sum(q * q, axis=-1, keepdims=True), eps2))  # (C,1)
        rk = jax.lax.rsqrt(jnp.maximum(jnp.sum(k * k, axis=-1, keepdims=True), eps2))  # (C,1)

        # Gram of raw q against column-normalised k; row normalisation + temperature folded
        # in as (C,1) scalings of the gram (no normalised (C,HW) tensors materialised).
        g = jax.lax.dot_general(q, k * rk, (((1,), (1,)), ((), ())),
                                preferred_element_type=jnp.float32)        # (C, C)
        logits = g * (rq * t_ref[...]) + bias_ref[...]                     # block-diag bias

        m = jnp.max(logits, axis=-1, keepdims=True)
        p = jnp.exp(logits - m)
        p = p / jnp.sum(p, axis=-1, keepdims=True)                         # per-head softmax

        out = jnp.dot(p, v, preferred_element_type=jnp.float32)            # (C, HW)

        # ---- 1x1 projection -------------------------------------------------------------
        y = jnp.dot(wproj_ref[...].astype(jnp.float32), out,
                    preferred_element_type=jnp.float32)                    # (C, HW)
        o_ref[0] = y.astype(o_ref.dtype)

    flops = B * (2 * C3 * C * HW + 27 * C3 * HW + 6 * C * C * HW)
    bytes_accessed = 4 * (2 * B * C * HW + C3 * C + 10 * C3 + 9 * HW + 2 * C * C + C)

    return pl.pallas_call(
        kernel,
        out_shape=jax.ShapeDtypeStruct((B, C, HW), x3.dtype),
        grid_spec=pltpu.PrefetchScalarGridSpec(
            num_scalar_prefetch=0,
            grid=(B,),
            in_specs=[
                pl.BlockSpec((1, C, HW), lambda b: (b, 0, 0)),      # x
                pl.BlockSpec((C3, C), lambda b: (0, 0)),            # qkv 1x1 weight
                pl.BlockSpec((9, C3, 1), lambda b: (0, 0, 0)),      # depthwise tap weights
                pl.BlockSpec((9, 1, HW), lambda b: (0, 0, 0)),      # padding border masks
                pl.BlockSpec((C, 1), lambda b: (0, 0)),             # per-row temperature
                pl.BlockSpec((C, C), lambda b: (0, 0)),             # block-diag head bias
                pl.BlockSpec((C, C), lambda b: (0, 0)),             # projection weight
            ],
            out_specs=pl.BlockSpec((1, C, HW), lambda b: (b, 0, 0)),
        ),
        compiler_params=pltpu.CompilerParams(
            dimension_semantics=("parallel",)),
        cost_estimate=pl.CostEstimate(
            flops=flops,
            transcendentals=B * (C * C + 2 * C),
            bytes_accessed=bytes_accessed),
    )(x3, qkv_w, dw_w9, tap_mask, t_row, head_bias, proj_w)


@functools.partial(jax.jit, static_argnames=("num_heads",))
def attention_forward(x, qkv_w, dw_w, proj_w, temperature, *, num_heads):
    """x: (B, C, H, W); qkv_w: (3C, C); dw_w: (3C, 3, 3); proj_w: (C, C);
    temperature: (num_heads, 1, 1). Returns (B, C, H, W)."""
    B, C, H, W = x.shape
    HW = H * W
    C3 = 3 * C
    ch = C // num_heads
    assert C % num_heads == 0
    assert C % 8 == 0 and HW % 128 == 0, "need C % 8 == 0 and H*W % 128 == 0"

    # ---- trace-time constants (layout plumbing only, no per-step runtime work) ----------
    # Per-channel depthwise tap weights, tap-major: t = (dy+1)*3 + (dx+1).
    dw_w9 = jnp.transpose(dw_w.reshape(C3, 9), (1, 0)).reshape(9, C3, 1).astype(jnp.float32)

    # Border masks implementing padding=1 on the flattened HW axis (one per tap).
    rows = jnp.arange(HW, dtype=jnp.int32) // W
    cols = jnp.arange(HW, dtype=jnp.int32) % W
    masks = []
    for dy in (-1, 0, 1):
        for dx in (-1, 0, 1):
            ok = ((rows + dy >= 0) & (rows + dy < H) &
                  (cols + dx >= 0) & (cols + dx < W))
            masks.append(ok.astype(jnp.float32))
    tap_mask = jnp.stack(masks, axis=0).reshape(9, 1, HW)

    # Per-channel (row) temperature and block-diagonal head bias for the fused softmax.
    t_row = jnp.repeat(temperature.reshape(num_heads), ch).reshape(C, 1).astype(jnp.float32)
    head_id = jnp.arange(C, dtype=jnp.int32) // ch
    head_bias = jnp.where(head_id[:, None] == head_id[None, :], 0.0, -1e30).astype(jnp.float32)

    y = _fused_attention(x.reshape(B, C, HW),
                         qkv_w.astype(jnp.float32), dw_w9, tap_mask,
                         t_row, head_bias, proj_w.astype(jnp.float32),
                         H=H, W=W)
    return y.reshape(B, C, H, W)


# --------------------------------------------------------------------------------------
# Pure-JAX reference (mirrors the PyTorch forward with bias=False)
# --------------------------------------------------------------------------------------
def _reference(x, qkv_w, dw_w, proj_w, temperature, num_heads):
    B, C, H, W = x.shape
    qkv = jnp.einsum('oc,bchw->bohw', qkv_w, x)
    xp = jnp.pad(qkv, ((0, 0), (0, 0), (1, 1), (1, 1)))
    acc = jnp.zeros_like(qkv)
    for dy in range(3):
        for dx in range(3):
            acc = acc + xp[:, :, dy:dy + H, dx:dx + W] * dw_w[None, :, dy, dx, None, None]
    q, k, v = jnp.split(acc, 3, axis=1)
    ch = C // num_heads
    q = q.reshape(B, num_heads, ch, H * W)
    k = k.reshape(B, num_heads, ch, H * W)
    v = v.reshape(B, num_heads, ch, H * W)
    qn = q / jnp.maximum(jnp.sqrt(jnp.sum(q * q, -1, keepdims=True)), 1e-12)
    kn = k / jnp.maximum(jnp.sqrt(jnp.sum(k * k, -1, keepdims=True)), 1e-12)
    attn = jnp.einsum('bhcs,bhds->bhcd', qn, kn) * temperature[None]
    attn = jax.nn.softmax(attn, axis=-1)
    out = jnp.einsum('bhcd,bhds->bhcs', attn, v).reshape(B, C, H, W)
    return jnp.einsum('oc,bchw->bohw', proj_w, out)


if __name__ == "__main__":
    key = jax.random.PRNGKey(0)
    batch, dim, num_heads, h, w = 2, 32, 4, 16, 16     # c_per_head=8, H*W=256 (lane-dense)

    k0, k1, k2, k3 = jax.random.split(key, 4)
    x = jax.random.normal(k0, (batch, dim, h, w), dtype=jnp.float32)
    # Parameters of Attention(dim=32, num_heads=4, bias=False); temperature init = ones.
    qkv_w = 0.1 * jax.random.normal(k1, (3 * dim, dim), dtype=jnp.float32)
    dw_w = 0.1 * jax.random.normal(k2, (3 * dim, 3, 3), dtype=jnp.float32)
    proj_w = 0.1 * jax.random.normal(k3, (dim, dim), dtype=jnp.float32)
    temperature = jnp.ones((num_heads, 1, 1), dtype=jnp.float32)

    out = attention_forward(x, qkv_w, dw_w, proj_w, temperature, num_heads=num_heads)
    out = jax.block_until_ready(out)

    ref = _reference(x, qkv_w, dw_w, proj_w, temperature, num_heads)
    assert out.shape == x.shape
    max_err = float(jnp.max(jnp.abs(out - ref)))
    assert jnp.allclose(out, ref, atol=2e-3, rtol=2e-3), max_err

    print("KERNEL_OK")
</pallas_src>

<mosaic_0001>
module attributes {stable_mosaic.version = 11 : i64} {
  func.func @kernel(%arg0: i32, %arg1: memref<1x32x256xf32, #tpu.memory_space<vmem>>, %arg2: memref<96x32xf32, #tpu.memory_space<vmem>>, %arg3: memref<9x96x1xf32, #tpu.memory_space<vmem>>, %arg4: memref<9x1x256xf32, #tpu.memory_space<vmem>>, %arg5: memref<32x1xf32, #tpu.memory_space<vmem>>, %arg6: memref<32x32xf32, #tpu.memory_space<vmem>>, %arg7: memref<32x32xf32, #tpu.memory_space<vmem>>, %arg8: memref<1x32x256xf32, #tpu.memory_space<vmem>>) attributes {dimension_semantics = [#tpu.dimension_semantics<parallel>], iteration_bounds = array<i64: 2>, scalar_prefetch = 0 : i64, scratch_operands = 0 : i64, tpu.core_type = #tpu.core_type<tc>, window_params = [{transform_indices = @transform_0, window_bounds = array<i64: 1, 32, 256>}, {pipeline_mode = #tpu.pipeline_mode<synchronous>, transform_indices = @transform_1, window_bounds = array<i64: 96, 32>}, {pipeline_mode = #tpu.pipeline_mode<synchronous>, transform_indices = @transform_2, window_bounds = array<i64: 9, 96, 1>}, {pipeline_mode = #tpu.pipeline_mode<synchronous>, transform_indices = @transform_3, window_bounds = array<i64: 9, 1, 256>}, {pipeline_mode = #tpu.pipeline_mode<synchronous>, transform_indices = @transform_4, window_bounds = array<i64: 32, 1>}, {pipeline_mode = #tpu.pipeline_mode<synchronous>, transform_indices = @transform_5, window_bounds = array<i64: 32, 32>}, {pipeline_mode = #tpu.pipeline_mode<synchronous>, transform_indices = @transform_6, window_bounds = array<i64: 32, 32>}, {transform_indices = @transform_7, window_bounds = array<i64: 1, 32, 256>}]} {
    %c0 = arith.constant 0 : index
    %c0_0 = arith.constant 0 : index
    %c0_1 = arith.constant 0 : index
    %0 = vector.load %arg1[%c0, %c0_0, %c0_1] : memref<1x32x256xf32, #tpu.memory_space<vmem>>, vector<1x32x256xf32>
    %1 = vector.shape_cast %0 : vector<1x32x256xf32> to vector<32x256xf32>
    %c0_2 = arith.constant 0 : index
    %c0_3 = arith.constant 0 : index
    %2 = vector.load %arg2[%c0_2, %c0_3] : memref<96x32xf32, #tpu.memory_space<vmem>>, vector<96x32xf32>
    %cst = arith.constant dense<0.000000e+00> : vector<96x256xf32>
    %3 = tpu.matmul %2, %1, %cst {dimension_numbers = #tpu.dot_dimension_numbers<[1], [0], [0], [1], [0, 0, 1, 1], [], []>} : vector<96x32xf32>, vector<32x256xf32>, vector<96x256xf32> -> vector<96x256xf32>
    %cst_4 = arith.constant 0.000000e+00 : f32
    %4 = vector.broadcast %cst_4 : f32 to vector<96x256xf32>
    %c17_i32 = arith.constant 17 : i32
    %5 = tpu.dynamic_rotate %3 by %c17_i32 dim 1 : vector<96x256xf32>, i32 -> vector<96x256xf32>
    %c0_5 = arith.constant 0 : index
    %c0_6 = arith.constant 0 : index
    %c0_7 = arith.constant 0 : index
    %6 = vector.load %arg4[%c0_5, %c0_6, %c0_7] : memref<9x1x256xf32, #tpu.memory_space<vmem>>, vector<1x1x256xf32>
    %7 = vector.shape_cast %6 : vector<1x1x256xf32> to vector<1x256xf32>
    %8 = vector.broadcast %7 : vector<1x256xf32> to vector<96x256xf32>
    %9 = arith.mulf %5, %8 : vector<96x256xf32>
    %c0_8 = arith.constant 0 : index
    %c0_9 = arith.constant 0 : index
    %c0_10 = arith.constant 0 : index
    %10 = vector.load %arg3[%c0_8, %c0_9, %c0_10] : memref<9x96x1xf32, #tpu.memory_space<vmem>>, vector<1x96x1xf32>
    %11 = vector.shape_cast %10 : vector<1x96x1xf32> to vector<96x1xf32>
    %12 = vector.broadcast %11 : vector<96x1xf32> to vector<96x256xf32>
    %13 = arith.mulf %9, %12 : vector<96x256xf32>
    %14 = arith.addf %4, %13 : vector<96x256xf32>
    %c16_i32 = arith.constant 16 : i32
    %15 = tpu.dynamic_rotate %3 by %c16_i32 dim 1 : vector<96x256xf32>, i32 -> vector<96x256xf32>
    %c1 = arith.constant 1 : index
    %c0_11 = arith.constant 0 : index
    %c0_12 = arith.constant 0 : index
    %16 = vector.load %arg4[%c1, %c0_11, %c0_12] : memref<9x1x256xf32, #tpu.memory_space<vmem>>, vector<1x1x256xf32>
    %17 = vector.shape_cast %16 : vector<1x1x256xf32> to vector<1x256xf32>
    %18 = vector.broadcast %17 : vector<1x256xf32> to vector<96x256xf32>
    %19 = arith.mulf %15, %18 : vector<96x256xf32>
    %c1_13 = arith.constant 1 : index
    %c0_14 = arith.constant 0 : index
    %c0_15 = arith.constant 0 : index
    %20 = vector.load %arg3[%c1_13, %c0_14, %c0_15] : memref<9x96x1xf32, #tpu.memory_space<vmem>>, vector<1x96x1xf32>
    %21 = vector.shape_cast %20 : vector<1x96x1xf32> to vector<96x1xf32>
    %22 = vector.broadcast %21 : vector<96x1xf32> to vector<96x256xf32>
    %23 = arith.mulf %19, %22 : vector<96x256xf32>
    %24 = arith.addf %14, %23 : vector<96x256xf32>
    %c15_i32 = arith.constant 15 : i32
    %25 = tpu.dynamic_rotate %3 by %c15_i32 dim 1 : vector<96x256xf32>, i32 -> vector<96x256xf32>
    %c2 = arith.constant 2 : index
    %c0_16 = arith.constant 0 : index
    %c0_17 = arith.constant 0 : index
    %26 = vector.load %arg4[%c2, %c0_16, %c0_17] : memref<9x1x256xf32, #tpu.memory_space<vmem>>, vector<1x1x256xf32>
    %27 = vector.shape_cast %26 : vector<1x1x256xf32> to vector<1x256xf32>
    %28 = vector.broadcast %27 : vector<1x256xf32> to vector<96x256xf32>
    %29 = arith.mulf %25, %28 : vector<96x256xf32>
    %c2_18 = arith.constant 2 : index
    %c0_19 = arith.constant 0 : index
    %c0_20 = arith.constant 0 : index
    %30 = vector.load %arg3[%c2_18, %c0_19, %c0_20] : memref<9x96x1xf32, #tpu.memory_space<vmem>>, vector<1x96x1xf32>
    %31 = vector.shape_cast %30 : vector<1x96x1xf32> to vector<96x1xf32>
    %32 = vector.broadcast %31 : vector<96x1xf32> to vector<96x256xf32>
    %33 = arith.mulf %29, %32 : vector<96x256xf32>
    %34 = arith.addf %24, %33 : vector<96x256xf32>
    %c1_i32 = arith.constant 1 : i32
    %35 = tpu.dynamic_rotate %3 by %c1_i32 dim 1 : vector<96x256xf32>, i32 -> vector<96x256xf32>
    %c3 = arith.constant 3 : index
    %c0_21 = arith.constant 0 : index
    %c0_22 = arith.constant 0 : index
    %36 = vector.load %arg4[%c3, %c0_21, %c0_22] : memref<9x1x256xf32, #tpu.memory_space<vmem>>, vector<1x1x256xf32>
    %37 = vector.shape_cast %36 : vector<1x1x256xf32> to vector<1x256xf32>
    %38 = vector.broadcast %37 : vector<1x256xf32> to vector<96x256xf32>
    %39 = arith.mulf %35, %38 : vector<96x256xf32>
    %c3_23 = arith.constant 3 : index
    %c0_24 = arith.constant 0 : index
    %c0_25 = arith.constant 0 : index
    %40 = vector.load %arg3[%c3_23, %c0_24, %c0_25] : memref<9x96x1xf32, #tpu.memory_space<vmem>>, vector<1x96x1xf32>
    %41 = vector.shape_cast %40 : vector<1x96x1xf32> to vector<96x1xf32>
    %42 = vector.broadcast %41 : vector<96x1xf32> to vector<96x256xf32>
    %43 = arith.mulf %39, %42 : vector<96x256xf32>
    %44 = arith.addf %34, %43 : vector<96x256xf32>
    %c4 = arith.constant 4 : index
    %c0_26 = arith.constant 0 : index
    %c0_27 = arith.constant 0 : index
    %45 = vector.load %arg4[%c4, %c0_26, %c0_27] : memref<9x1x256xf32, #tpu.memory_space<vmem>>, vector<1x1x256xf32>
    %46 = vector.shape_cast %45 : vector<1x1x256xf32> to vector<1x256xf32>
    %47 = vector.broadcast %46 : vector<1x256xf32> to vector<96x256xf32>
    %48 = arith.mulf %3, %47 : vector<96x256xf32>
    %c4_28 = arith.constant 4 : index
    %c0_29 = arith.constant 0 : index
    %c0_30 = arith.constant 0 : index
    %49 = vector.load %arg3[%c4_28, %c0_29, %c0_30] : memref<9x96x1xf32, #tpu.memory_space<vmem>>, vector<1x96x1xf32>
    %50 = vector.shape_cast %49 : vector<1x96x1xf32> to vector<96x1xf32>
    %51 = vector.broadcast %50 : vector<96x1xf32> to vector<96x256xf32>
    %52 = arith.mulf %48, %51 : vector<96x256xf32>
    %53 = arith.addf %44, %52 : vector<96x256xf32>
    %c255_i32 = arith.constant 255 : i32
    %54 = tpu.dynamic_rotate %3 by %c255_i32 dim 1 : vector<96x256xf32>, i32 -> vector<96x256xf32>
    %c5 = arith.constant 5 : index
    %c0_31 = arith.constant 0 : index
    %c0_32 = arith.constant 0 : index
    %55 = vector.load %arg4[%c5, %c0_31, %c0_32] : memref<9x1x256xf32, #tpu.memory_space<vmem>>, vector<1x1x256xf32>
    %56 = vector.shape_cast %55 : vector<1x1x256xf32> to vector<1x256xf32>
    %57 = vector.broadcast %56 : vector<1x256xf32> to vector<96x256xf32>
    %58 = arith.mulf %54, %57 : vector<96x256xf32>
    %c5_33 = arith.constant 5 : index
    %c0_34 = arith.constant 0 : index
    %c0_35 = arith.constant 0 : index
    %59 = vector.load %arg3[%c5_33, %c0_34, %c0_35] : memref<9x96x1xf32, #tpu.memory_space<vmem>>, vector<1x96x1xf32>
    %60 = vector.shape_cast %59 : vector<1x96x1xf32> to vector<96x1xf32>
    %61 = vector.broadcast %60 : vector<96x1xf32> to vector<96x256xf32>
    %62 = arith.mulf %58, %61 : vector<96x256xf32>
    %63 = arith.addf %53, %62 : vector<96x256xf32>
    %c241_i32 = arith.constant 241 : i32
    %64 = tpu.dynamic_rotate %3 by %c241_i32 dim 1 : vector<96x256xf32>, i32 -> vector<96x256xf32>
    %c6 = arith.constant 6 : index
    %c0_36 = arith.constant 0 : index
    %c0_37 = arith.constant 0 : index
    %65 = vector.load %arg4[%c6, %c0_36, %c0_37] : memref<9x1x256xf32, #tpu.memory_space<vmem>>, vector<1x1x256xf32>
    %66 = vector.shape_cast %65 : vector<1x1x256xf32> to vector<1x256xf32>
    %67 = vector.broadcast %66 : vector<1x256xf32> to vector<96x256xf32>
    %68 = arith.mulf %64, %67 : vector<96x256xf32>
    %c6_38 = arith.constant 6 : index
    %c0_39 = arith.constant 0 : index
    %c0_40 = arith.constant 0 : index
    %69 = vector.load %arg3[%c6_38, %c0_39, %c0_40] : memref<9x96x1xf32, #tpu.memory_space<vmem>>, vector<1x96x1xf32>
    %70 = vector.shape_cast %69 : vector<1x96x1xf32> to vector<96x1xf32>
    %71 = vector.broadcast %70 : vector<96x1xf32> to vector<96x256xf32>
    %72 = arith.mulf %68, %71 : vector<96x256xf32>
    %73 = arith.addf %63, %72 : vector<96x256xf32>
    %c240_i32 = arith.constant 240 : i32
    %74 = tpu.dynamic_rotate %3 by %c240_i32 dim 1 : vector<96x256xf32>, i32 -> vector<96x256xf32>
    %c7 = arith.constant 7 : index
    %c0_41 = arith.constant 0 : index
    %c0_42 = arith.constant 0 : index
    %75 = vector.load %arg4[%c7, %c0_41, %c0_42] : memref<9x1x256xf32, #tpu.memory_space<vmem>>, vector<1x1x256xf32>
    %76 = vector.shape_cast %75 : vector<1x1x256xf32> to vector<1x256xf32>
    %77 = vector.broadcast %76 : vector<1x256xf32> to vector<96x256xf32>
    %78 = arith.mulf %74, %77 : vector<96x256xf32>
    %c7_43 = arith.constant 7 : index
    %c0_44 = arith.constant 0 : index
    %c0_45 = arith.constant 0 : index
    %79 = vector.load %arg3[%c7_43, %c0_44, %c0_45] : memref<9x96x1xf32, #tpu.memory_space<vmem>>, vector<1x96x1xf32>
    %80 = vector.shape_cast %79 : vector<1x96x1xf32> to vector<96x1xf32>
    %81 = vector.broadcast %80 : vector<96x1xf32> to vector<96x256xf32>
    %82 = arith.mulf %78, %81 : vector<96x256xf32>
    %83 = arith.addf %73, %82 : vector<96x256xf32>
    %c239_i32 = arith.constant 239 : i32
    %84 = tpu.dynamic_rotate %3 by %c239_i32 dim 1 : vector<96x256xf32>, i32 -> vector<96x256xf32>
    %c8 = arith.constant 8 : index
    %c0_46 = arith.constant 0 : index
    %c0_47 = arith.constant 0 : index
    %85 = vector.load %arg4[%c8, %c0_46, %c0_47] : memref<9x1x256xf32, #tpu.memory_space<vmem>>, vector<1x1x256xf32>
    %86 = vector.shape_cast %85 : vector<1x1x256xf32> to vector<1x256xf32>
    %87 = vector.broadcast %86 : vector<1x256xf32> to vector<96x256xf32>
    %88 = arith.mulf %84, %87 : vector<96x256xf32>
    %c8_48 = arith.constant 8 : index
    %c0_49 = arith.constant 0 : index
    %c0_50 = arith.constant 0 : index
    %89 = vector.load %arg3[%c8_48, %c0_49, %c0_50] : memref<9x96x1xf32, #tpu.memory_space<vmem>>, vector<1x96x1xf32>
    %90 = vector.shape_cast %89 : vector<1x96x1xf32> to vector<96x1xf32>
    %91 = vector.broadcast %90 : vector<96x1xf32> to vector<96x256xf32>
    %92 = arith.mulf %88, %91 : vector<96x256xf32>
    %93 = arith.addf %83, %92 : vector<96x256xf32>
    %94 = vector.extract_strided_slice %93 {offsets = [0, 0], sizes = [32, 256], strides = [1, 1]} : vector<96x256xf32> to vector<32x256xf32>
    %95 = vector.extract_strided_slice %93 {offsets = [32, 0], sizes = [32, 256], strides = [1, 1]} : vector<96x256xf32> to vector<32x256xf32>
    %96 = vector.extract_strided_slice %93 {offsets = [64, 0], sizes = [32, 256], strides = [1, 1]} : vector<96x256xf32> to vector<32x256xf32>
    %97 = arith.mulf %94, %94 : vector<32x256xf32>
    %cst_51 = arith.constant dense<0.000000e+00> : vector<32xf32>
    %98 = vector.multi_reduction <add>, %97, %cst_51 [1] : vector<32x256xf32> to vector<32xf32>
    %99 = vector.shape_cast %98 : vector<32xf32> to vector<32x1xf32>
    %cst_52 = arith.constant 1.000000e-24 : f32
    %100 = vector.broadcast %cst_52 : f32 to vector<32x1xf32>
    %101 = arith.maximumf %99, %100 : vector<32x1xf32>
    %102 = math.rsqrt %101 : vector<32x1xf32>
    %103 = arith.mulf %95, %95 : vector<32x256xf32>
    %cst_53 = arith.constant dense<0.000000e+00> : vector<32xf32>
    %104 = vector.multi_reduction <add>, %103, %cst_53 [1] : vector<32x256xf32> to vector<32xf32>
    %105 = vector.shape_cast %104 : vector<32xf32> to vector<32x1xf32>
    %cst_54 = arith.constant 1.000000e-24 : f32
    %106 = vector.broadcast %cst_54 : f32 to vector<32x1xf32>
    %107 = arith.maximumf %105, %106 : vector<32x1xf32>
    %108 = math.rsqrt %107 : vector<32x1xf32>
    %109 = vector.broadcast %108 : vector<32x1xf32> to vector<32x256xf32>
    %110 = arith.mulf %95, %109 : vector<32x256xf32>
    %cst_55 = arith.constant dense<0.000000e+00> : vector<32x32xf32>
    %111 = tpu.matmul %94, %110, %cst_55 {dimension_numbers = #tpu.dot_dimension_numbers<[1], [1], [0], [0], [0, 0, 1, 0], [], []>} : vector<32x256xf32>, vector<32x256xf32>, vector<32x32xf32> -> vector<32x32xf32>
    %c0_56 = arith.constant 0 : index
    %c0_57 = arith.constant 0 : index
    %112 = vector.load %arg5[%c0_56, %c0_57] : memref<32x1xf32, #tpu.memory_space<vmem>>, vector<32x1xf32>
    %113 = arith.mulf %102, %112 : vector<32x1xf32>
    %114 = vector.broadcast %113 : vector<32x1xf32> to vector<32x32xf32>
    %115 = arith.mulf %111, %114 : vector<32x32xf32>
    %c0_58 = arith.constant 0 : index
    %c0_59 = arith.constant 0 : index
    %116 = vector.load %arg6[%c0_58, %c0_59] : memref<32x32xf32, #tpu.memory_space<vmem>>, vector<32x32xf32>
    %117 = arith.addf %115, %116 : vector<32x32xf32>
    %cst_60 = arith.constant dense<0xFF800000> : vector<32xf32>
    %118 = vector.multi_reduction <maximumf>, %117, %cst_60 [1] : vector<32x32xf32> to vector<32xf32>
    %119 = vector.shape_cast %118 : vector<32xf32> to vector<32x1xf32>
    %120 = vector.broadcast %119 : vector<32x1xf32> to vector<32x32xf32>
    %121 = arith.subf %117, %120 : vector<32x32xf32>
    %122 = math.exp %121 : vector<32x32xf32>
    %cst_61 = arith.constant dense<0.000000e+00> : vector<32xf32>
    %123 = vector.multi_reduction <add>, %122, %cst_61 [1] : vector<32x32xf32> to vector<32xf32>
    %124 = vector.shape_cast %123 : vector<32xf32> to vector<32x1xf32>
    %125 = vector.broadcast %124 : vector<32x1xf32> to vector<32x32xf32>
    %126 = arith.divf %122, %125 : vector<32x32xf32>
    %cst_62 = arith.constant dense<0.000000e+00> : vector<32x256xf32>
    %127 = tpu.matmul %126, %96, %cst_62 {dimension_numbers = #tpu.dot_dimension_numbers<[1], [0], [0], [1], [0, 0, 1, 1], [], []>} : vector<32x32xf32>, vector<32x256xf32>, vector<32x256xf32> -> vector<32x256xf32>
    %c0_63 = arith.constant 0 : index
    %c0_64 = arith.constant 0 : index
    %128 = vector.load %arg7[%c0_63, %c0_64] : memref<32x32xf32, #tpu.memory_space<vmem>>, vector<32x32xf32>
    %cst_65 = arith.constant dense<0.000000e+00> : vector<32x256xf32>
    %129 = tpu.matmul %128, %127, %cst_65 {dimension_numbers = #tpu.dot_dimension_numbers<[1], [0], [0], [1], [0, 0, 1, 1], [], []>} : vector<32x32xf32>, vector<32x256xf32>, vector<32x256xf32> -> vector<32x256xf32>
    %c0_66 = arith.constant 0 : index
    %c0_67 = arith.constant 0 : index
    %c0_68 = arith.constant 0 : index
    %130 = vector.load %arg8[%c0_66, %c0_67, %c0_68] : memref<1x32x256xf32, #tpu.memory_space<vmem>>, vector<1x32x256xf32>
    %131 = vector.shape_cast %130 : vector<1x32x256xf32> to vector<32x256xf32>
    %132 = vector.shape_cast %129 : vector<32x256xf32> to vector<1x32x256xf32>
    tpu.vector_store %arg8[%c0_66, %c0_67, %c0_68], %132 {strides = array<i32>} : memref<1x32x256xf32, #tpu.memory_space<vmem>>, vector<1x32x256xf32>,
    return
  }
  func.func @transform_0(%arg0: i32) -> (i32, i32, i32) {
    %c0_i32 = arith.constant 0 : i32
    %c0_i32_0 = arith.constant 0 : i32
    %c0_i32_1 = arith.constant 0 : i32
    return %arg0, %c0_i32, %c0_i32_0 : i32, i32, i32
  }
  func.func @transform_1(%arg0: i32) -> (i32, i32) {
    %c0_i32 = arith.constant 0 : i32
    %c0_i32_0 = arith.constant 0 : i32
    %c0_i32_1 = arith.constant 0 : i32
    return %c0_i32, %c0_i32_0 : i32, i32
  }
  func.func @transform_2(%arg0: i32) -> (i32, i32, i32) {
    %c0_i32 = arith.constant 0 : i32
    %c0_i32_0 = arith.constant 0 : i32
    %c0_i32_1 = arith.constant 0 : i32
    %c0_i32_2 = arith.constant 0 : i32
    return %c0_i32, %c0_i32_0, %c0_i32_1 : i32, i32, i32
  }
  func.func @transform_3(%arg0: i32) -> (i32, i32, i32) {
    %c0_i32 = arith.constant 0 : i32
    %c0_i32_0 = arith.constant 0 : i32
    %c0_i32_1 = arith.constant 0 : i32
    %c0_i32_2 = arith.constant 0 : i32
    return %c0_i32, %c0_i32_0, %c0_i32_1 : i32, i32, i32
  }
  func.func @transform_4(%arg0: i32) -> (i32, i32) {
    %c0_i32 = arith.constant 0 : i32
    %c0_i32_0 = arith.constant 0 : i32
    %c0_i32_1 = arith.constant 0 : i32
    return %c0_i32, %c0_i32_0 : i32, i32
  }
  func.func @transform_5(%arg0: i32) -> (i32, i32) {
    %c0_i32 = arith.constant 0 : i32
    %c0_i32_0 = arith.constant 0 : i32
    %c0_i32_1 = arith.constant 0 : i32
    return %c0_i32, %c0_i32_0 : i32, i32
  }
  func.func @transform_6(%arg0: i32) -> (i32, i32) {
    %c0_i32 = arith.constant 0 : i32
    %c0_i32_0 = arith.constant 0 : i32
    %c0_i32_1 = arith.constant 0 : i32
    return %c0_i32, %c0_i32_0 : i32, i32
  }
  func.func @transform_7(%arg0: i32) -> (i32, i32, i32) {
    %c0_i32 = arith.constant 0 : i32
    %c0_i32_0 = arith.constant 0 : i32
    %c0_i32_1 = arith.constant 0 : i32
    return %arg0, %c0_i32, %c0_i32_0 : i32, i32, i32
  }
}

</mosaic_0001>

<llo_original>
// kernel: attention_forward.1
$region0: #{attention_forward.1}
  #allocation0 [shape = 'u32[]', space=smem, size = 0x4, offset = 0x4, fixed_abs, tag = 'smem constant byte address 0x4 - core index']
  #allocation1 [shape = 'u32[144,128]{1,0:T(1,128)}', space=vmem, size = 0x12000, scoped, tag = 'internal scratch']
  %s0 = inlined_call_operand.vmem [shape: f32[2,32,256], index: 0, kind: input, shape index: {}]
  %s1 = inlined_call_operand.vmem [shape: f32[96,32], index: 1, kind: input, shape index: {}]
  %s2 = inlined_call_operand.vmem [shape: f32[9,96,1], index: 2, kind: input, shape index: {}]
  %s3 = inlined_call_operand.vmem [shape: f32[9,1,256], index: 3, kind: input, shape index: {}]
  %s4 = inlined_call_operand.vmem [shape: f32[32,1], index: 4, kind: input, shape index: {}]
  %s5 = inlined_call_operand.vmem [shape: f32[32,32], index: 5, kind: input, shape index: {}]
  %s6 = inlined_call_operand.vmem [shape: f32[32,32], index: 6, kind: input, shape index: {}]
  %s7 = inlined_call_operand.vmem [shape: f32[2,32,256], index: 7, kind: output, shape index: {}]
  %s8 = sld [smem:[#allocation0]]
  $region61: #{attention_forward.1} parent=0
    _
  %s10 = ssub.s32 1, %s8
  %s11 = scalar_select 0, %s10, %s8
  loop: start=0, step=1, limit=4
  $region2: #{attention_forward.1} parent=0 // loop_pre_header
    _
  $region3: #{attention_forward.1} parent=0 // loop_header
    %s13 = sphi 0, %s17
    %p14 = scmp.ge.s32.totalorder %s13, 4
    %s23 = sphi 0, %s25
    %s26 = sphi 0, %s23
    %s27 = sphi 0, %s26
    %s43 = sphi 0, %s27
    %s47 = sphi 0, %s47
    %s49 = sphi 0, %s47
    %s50 = sphi 0, %s49
    %s64 = sphi 0, %s50
    %s68 = sphi 0, %s68
    %s70 = sphi 0, %s68
    %s71 = sphi 0, %s70
    %s85 = sphi 0, %s71
    %s89 = sphi 0, %s89
    %s91 = sphi 0, %s89
    %s92 = sphi 0, %s91
    %s106 = sphi 0, %s92
    %s110 = sphi 0, %s110
    %s112 = sphi 0, %s110
    %s113 = sphi 0, %s112
    %s127 = sphi 0, %s113
    %s131 = sphi 0, %s131
    %s133 = sphi 0, %s131
    %s134 = sphi 0, %s133
    %s148 = sphi 0, %s134
    %s152 = sphi 0, %s152
    %s154 = sphi 0, %s152
    %s155 = sphi 0, %s154
    %s169 = sphi 0, %s155
    %s175 = sphi 0, %s177
    %s178 = sphi 0, %s175
    %s179 = sphi 0, %s178
    %s195 = sphi 0, %s179
  $region4: #{attention_forward.1} parent=0 // loop_header_branch
    %16 = sbr.rel (%p14) target = $region8
  $region5: #{attention_forward.1} parent=0 // loop_body
    %s18 = ssub.s32 %s13, 1
    %s19 = ssub.s32 %s13, 2
    %s20 = sadd.s32 %s13, 1
    %s21 = ssub.s32 %s13, %s20
    %p22 = scmp.eq.s32.totalorder %s21, 0
    %s24 = sadd.s32 %s23, 1
    %s25 = scalar_select %p22, %s23, %s24
    %p28 = pneg %p22
    %p29 = scmp.eq.s32.totalorder %s13, 1
    %p30 = por %p28, %p29
    %p31 = scmp.ne.s32.totalorder %s23, %s26
    %p32 = scmp.eq.s32.totalorder %s13, 0
    %p33 = por %p31, %p32
    %p34 = scmp.ne.s32.totalorder %s23, %s26
    %p35 = scmp.eq.s32.totalorder %s18, 1
    %p36 = por %p34, %p35
    %p37 = scmp.ne.s32.totalorder %s26, %s27
    %p38 = scmp.eq.s32.totalorder %s18, 0
    %p39 = por %p37, %p38
    %p40 = scmp.ne.s32.totalorder %s26, %s27
    %p41 = scmp.eq.s32.totalorder %s19, 1
    %p42 = por %p40, %p41
    %p44 = scmp.ne.s32.totalorder %s27, %s43
    %p45 = scmp.eq.s32.totalorder %s19, 0
    %p46 = por %p44, %p45
    %s48 = sadd.s32 %s47, 1
    %p51 = scmp.eq.s32.totalorder %s13, 1
    %p52 = scmp.ne.s32.totalorder %s47, %s49
    %p53 = scmp.eq.s32.totalorder %s13, 0
    %p54 = por %p52, %p53
    %p55 = scmp.ne.s32.totalorder %s47, %s49
    %p56 = scmp.eq.s32.totalorder %s18, 1
    %p57 = por %p55, %p56
    %p58 = scmp.ne.s32.totalorder %s49, %s50
    %p59 = scmp.eq.s32.totalorder %s18, 0
    %p60 = por %p58, %p59
    %p61 = scmp.ne.s32.totalorder %s49, %s50
    %p62 = scmp.eq.s32.totalorder %s19, 1
    %p63 = por %p61, %p62
    %p65 = scmp.ne.s32.totalorder %s50, %s64
    %p66 = scmp.eq.s32.totalorder %s19, 0
    %p67 = por %p65, %p66
    %s69 = sadd.s32 %s68, 1
    %p72 = scmp.eq.s32.totalorder %s13, 1
    %p73 = scmp.ne.s32.totalorder %s68, %s70
    %p74 = scmp.eq.s32.totalorder %s13, 0
    %p75 = por %p73, %p74
    %p76 = scmp.ne.s32.totalorder %s68, %s70
    %p77 = scmp.eq.s32.totalorder %s18, 1
    %p78 = por %p76, %p77
    %p79 = scmp.ne.s32.totalorder %s70, %s71
    %p80 = scmp.eq.s32.totalorder %s18, 0
    %p81 = por %p79, %p80
    %p82 = scmp.ne.s32.totalorder %s70, %s71
    %p83 = scmp.eq.s32.totalorder %s19, 1
    %p84 = por %p82, %p83
    %p86 = scmp.ne.s32.totalorder %s71, %s85
    %p87 = scmp.eq.s32.totalorder %s19, 0
    %p88 = por %p86, %p87
    %s90 = sadd.s32 %s89, 1
    %p93 = scmp.eq.s32.totalorder %s13, 1
    %p94 = scmp.ne.s32.totalorder %s89, %s91
    %p95 = scmp.eq.s32.totalorder %s13, 0
    %p96 = por %p94, %p95
    %p97 = scmp.ne.s32.totalorder %s89, %s91
    %p98 = scmp.eq.s32.totalorder %s18, 1
    %p99 = por %p97, %p98
    %p100 = scmp.ne.s32.totalorder %s91, %s92
    %p101 = scmp.eq.s32.totalorder %s18, 0
    %p102 = por %p100, %p101
    %p103 = scmp.ne.s32.totalorder %s91, %s92
    %p104 = scmp.eq.s32.totalorder %s19, 1
    %p105 = por %p103, %p104
    %p107 = scmp.ne.s32.totalorder %s92, %s106
    %p108 = scmp.eq.s32.totalorder %s19, 0
    %p109 = por %p107, %p108
    %s111 = sadd.s32 %s110, 1
    %p114 = scmp.eq.s32.totalorder %s13, 1
    %p115 = scmp.ne.s32.totalorder %s110, %s112
    %p116 = scmp.eq.s32.totalorder %s13, 0
    %p117 = por %p115, %p116
    %p118 = scmp.ne.s32.totalorder %s110, %s112
    %p119 = scmp.eq.s32.totalorder %s18, 1
    %p120 = por %p118, %p119
    %p121 = scmp.ne.s32.totalorder %s112, %s113
    %p122 = scmp.eq.s32.totalorder %s18, 0
    %p123 = por %p121, %p122
    %p124 = scmp.ne.s32.totalorder %s112, %s113
    %p125 = scmp.eq.s32.totalorder %s19, 1
    %p126 = por %p124, %p125
    %p128 = scmp.ne.s32.totalorder %s113, %s127
    %p129 = scmp.eq.s32.totalorder %s19, 0
    %p130 = por %p128, %p129
    %s132 = sadd.s32 %s131, 1
    %p135 = scmp.eq.s32.totalorder %s13, 1
    %p136 = scmp.ne.s32.totalorder %s131, %s133
    %p137 = scmp.eq.s32.totalorder %s13, 0
    %p138 = por %p136, %p137
    %p139 = scmp.ne.s32.totalorder %s131, %s133
    %p140 = scmp.eq.s32.totalorder %s18, 1
    %p141 = por %p139, %p140
    %p142 = scmp.ne.s32.totalorder %s133, %s134
    %p143 = scmp.eq.s32.totalorder %s18, 0
    %p144 = por %p142, %p143
    %p145 = scmp.ne.s32.totalorder %s133, %s134
    %p146 = scmp.eq.s32.totalorder %s19, 1
    %p147 = por %p145, %p146
    %p149 = scmp.ne.s32.totalorder %s134, %s148
    %p150 = scmp.eq.s32.totalorder %s19, 0
    %p151 = por %p149, %p150
    %s153 = sadd.s32 %s152, 1
    %p156 = scmp.eq.s32.totalorder %s13, 1
    %p157 = scmp.ne.s32.totalorder %s152, %s154
    %p158 = scmp.eq.s32.totalorder %s13, 0
    %p159 = por %p157, %p158
    %p160 = scmp.ne.s32.totalorder %s152, %s154
    %p161 = scmp.eq.s32.totalorder %s18, 1
    %p162 = por %p160, %p161
    %p163 = scmp.ne.s32.totalorder %s154, %s155
    %p164 = scmp.eq.s32.totalorder %s18, 0
    %p165 = por %p163, %p164
    %p166 = scmp.ne.s32.totalorder %s154, %s155
    %p167 = scmp.eq.s32.totalorder %s19, 1
    %p168 = por %p166, %p167
    %p170 = scmp.ne.s32.totalorder %s155, %s169
    %p171 = scmp.eq.s32.totalorder %s19, 0
    %p172 = por %p170, %p171
    %s173 = ssub.s32 %s13, %s20
    %p174 = scmp.eq.s32.totalorder %s173, 0
    %s176 = sadd.s32 %s175, 1
    %s177 = scalar_select %p174, %s175, %s176
    %p180 = pneg %p174
    %p181 = scmp.eq.s32.totalorder %s13, 1
    %p182 = por %p180, %p181
    %p183 = scmp.ne.s32.totalorder %s175, %s178
    %p184 = scmp.eq.s32.totalorder %s13, 0
    %p185 = por %p183, %p184
    %p186 = scmp.ne.s32.totalorder %s175, %s178
    %p187 = scmp.eq.s32.totalorder %s18, 1
    %p188 = por %p186, %p187
    %p189 = scmp.ne.s32.totalorder %s178, %s179
    %p190 = scmp.eq.s32.totalorder %s18, 0
    %p191 = por %p189, %p190
    %p192 = scmp.ne.s32.totalorder %s178, %s179
    %p193 = scmp.eq.s32.totalorder %s19, 1
    %p194 = por %p192, %p193
    %p196 = scmp.ne.s32.totalorder %s179, %s195
    %p197 = scmp.eq.s32.totalorder %s19, 0
    %p198 = por %p196, %p197
    %p199 = scmp.le.s32.totalorder 1, %s13
    %p200 = scmp.lt.s32.totalorder %s13, 3
    %p201 = pnand %p199, %p200
    %p202 = pneg %p201
    // Predicated region
    $region9: #{attention_forward.1} parent=5 // pred_check
      _
    $region10: #{attention_forward.1} parent=5 // pred_check_branch
      %204 = sbr.rel (%p201) target = $region12
    $region11: #{attention_forward.1} parent=5 // pred_region
      %s205 = ssub.s32 %s13, 1
      // Predicated region
      $region13: #{attention_forward.1} parent=11 // pred_check
        %p206 = pneg %p60
      $region14: #{attention_forward.1} parent=11 // pred_check_branch
        %208 = sbr.rel (%p206) target = $region16
      $region15: #{attention_forward.1} parent=11 // pred_region
        _
      $region16: #{attention_forward.1} parent=11 // pred_fallthru
        _
      // Predicated region
      $region17: #{attention_forward.1} parent=11 // pred_check
        %p209 = pneg %p81
      $region18: #{attention_forward.1} parent=11 // pred_check_branch
        %211 = sbr.rel (%p209) target = $region20
      $region19: #{attention_forward.1} parent=11 // pred_region
        _
      $region20: #{attention_forward.1} parent=11 // pred_fallthru
        _
      // Predicated region
      $region21: #{attention_forward.1} parent=11 // pred_check
        %p212 = pneg %p102
      $region22: #{attention_forward.1} parent=11 // pred_check_branch
        %214 = sbr.rel (%p212) target = $region24
      $region23: #{attention_forward.1} parent=11 // pred_region
        _
      $region24: #{attention_forward.1} parent=11 // pred_fallthru
        _
      // Predicated region
      $region25: #{attention_forward.1} parent=11 // pred_check
        %p215 = pneg %p123
      $region26: #{attention_forward.1} parent=11 // pred_check_branch
        %217 = sbr.rel (%p215) target = $region28
      $region27: #{attention_forward.1} parent=11 // pred_region
        _
      $region28: #{attention_forward.1} parent=11 // pred_fallthru
        _
      // Predicated region
      $region29: #{attention_forward.1} parent=11 // pred_check
        %p218 = pneg %p144
      $region30: #{attention_forward.1} parent=11 // pred_check_branch
        %220 = sbr.rel (%p218) target = $region32
      $region31: #{attention_forward.1} parent=11 // pred_region
        _
      $region32: #{attention_forward.1} parent=11 // pred_fallthru
        _
      // Predicated region
      $region33: #{attention_forward.1} parent=11 // pred_check
        %p221 = pneg %p165
      $region34: #{attention_forward.1} parent=11 // pred_check_branch
        %223 = sbr.rel (%p221) target = $region36
      $region35: #{attention_forward.1} parent=11 // pred_region
        _
      $region36: #{attention_forward.1} parent=11 // pred_fallthru
        _
    $region12: #{attention_forward.1} parent=5 // pred_fallthru
      _
    %p224 = scmp.lt.s32.totalorder %s13, 2
    // Predicated region
    $region37: #{attention_forward.1} parent=5 // pred_check
      %p225 = pneg %p224
    $region38: #{attention_forward.1} parent=5 // pred_check_branch
      %227 = sbr.rel (%p225) target = $region40
    $region39: #{attention_forward.1} parent=5 // pred_region
      // Predicated region
      $region41: #{attention_forward.1} parent=39 // pred_check
        %p228 = pneg %p33
      $region42: #{attention_forward.1} parent=39 // pred_check_branch
        %230 = sbr.rel (%p228) target = $region44
      $region43: #{attention_forward.1} parent=39 // pred_region
        %p231 = scmp.lt.s32.totalorder %s13, 1
        %s232 = scalar_select %p231, %s13, 1
        %s233 = smul.addr %s232, 8
        %s234 = smul.addr %s233, 8
        %s235 = scalar_lea.vmem %s0, %s234
      $region44: #{attention_forward.1} parent=39 // pred_fallthru
        _
    $region40: #{attention_forward.1} parent=5 // pred_fallthru
      _
    %p236 = scmp.le.s32.totalorder 1, %s13
    %p237 = scmp.lt.s32.totalorder %s13, 3
    %p238 = pnand %p236, %p237
    %p239 = pneg %p238
    // Predicated region
    $region45: #{attention_forward.1} parent=5 // pred_check
      _
    $region46: #{attention_forward.1} parent=5 // pred_check_branch
      %241 = sbr.rel (%p238) target = $region48
    $region47: #{attention_forward.1} parent=5 // pred_region
      %s242 = ssub.s32 %s13, 1
      %p243 = scmp.lt.s32.totalorder %s18, 1
      %s244 = scalar_select %p243, %s18, 1
      %s245 = smul.addr %s244, 8
      %s246 = smul.addr %s245, 8
      %s247 = scalar_lea.vmem %s0, %s246
      %p248 = pneg %p39
      %p249 = pneg %p36
      %p250 = pneg %p60
      %p251 = pneg %p57
      %p252 = pneg %p81
      %p253 = pneg %p78
      %p254 = pneg %p102
      %p255 = pneg %p99
      %p256 = pneg %p123
      %p257 = pneg %p120
      %p258 = pneg %p144
      %p259 = pneg %p141
      %p260 = pneg %p165
      %p261 = pneg %p162
      %p262 = pneg %p191
      %p263 = pneg %p188
      %p264 = scmp.lt.s32.totalorder %s18, 1
      %s265 = scalar_select %p264, %s18, 1
      %s266 = smul.addr %s265, 8
      %s267 = smul.addr %s266, 8
      %s268 = scalar_lea.vmem %s7, %s267
      %p269 = scmp.lt.s32.totalorder %s18, 1
      %s270 = scalar_select %p269, %s18, 1
      %s271 = smul.addr %s270, 8
      %s272 = smul.addr %s271, 8
      %s273 = scalar_lea.vmem %s0, %s272
      %p274 = scmp.lt.s32.totalorder %s18, 1
      %s275 = scalar_select %p274, %s18, 1
      %s276 = smul.addr %s275, 8
      %s277 = smul.addr %s276, 8
      %s278 = scalar_lea.vmem %s7, %s277
      %v279 = vld [vmem:[%s273] sm:$0xff]
      %v280 = vld [vmem:[%s273 + $0x8] sm:$0xff]
      %v281 = vld [vmem:[%s273 + $0x10] sm:$0xff]
      %v282 = vld [vmem:[%s273 + $0x18] sm:$0xff]
      %v283 = vld [vmem:[%s273 + $0x20] sm:$0xff]
      %v284 = vld [vmem:[%s273 + $0x28] sm:$0xff]
      %v285 = vld [vmem:[%s273 + $0x30] sm:$0xff]
      %v286 = vld [vmem:[%s273 + $0x38] sm:$0xff]
      %v287 = vld [vmem:[%s1] sm:$0xff]
      %v288 = vld [vmem:[%s1 + $0x8] sm:$0xff]
      %v289 = vld [vmem:[%s1 + $0x10] sm:$0xff]
      %v290 = vld [vmem:[%s1 + $0x18] sm:$0xff]
      %v291 = vld [vmem:[%s1 + $0x20] sm:$0xff]
      %v292 = vld [vmem:[%s1 + $0x28] sm:$0xff]
      %v293 = vld [vmem:[%s1 + $0x30] sm:$0xff]
      %v294 = vld [vmem:[%s1 + $0x38] sm:$0xff]
      %v295 = vld [vmem:[%s1 + $0x40] sm:$0xff]
      %v296 = vld [vmem:[%s1 + $0x48] sm:$0xff]
      %v297 = vld [vmem:[%s1 + $0x50] sm:$0xff]
      %v298 = vld [vmem:[%s1 + $0x58] sm:$0xff]
      %vm299 = vcmask 261120
      %v301 = vsel %vm299, %v287, 0
      %v304 = vsel %vm299, %v288, 0
      %v307 = vsel %vm299, %v289, 0
      %v310 = vsel %vm299, %v290, 0
      %v313 = vsel %vm299, %v291, 0
      %v316 = vsel %vm299, %v292, 0
      %v319 = vsel %vm299, %v293, 0
      %v322 = vsel %vm299, %v294, 0
      %v325 = vsel %vm299, %v295, 0
      %v328 = vsel %vm299, %v296, 0
      %v331 = vsel %vm299, %v297, 0
      %v334 = vsel %vm299, %v298, 0
      %336 = vmatprep.subr.mxu0 %v280
      %337 = vmatpush1.msra.mxu0 %v279
      %338 = vmatprep.subr.mxu0 %v282
      %339 = vmatpush1.msra.mxu0 %v281
      %340 = vmatprep.subr.mxu0 %v284
      %341 = vmatpush1.msra.mxu0 %v283
      %342 = vmatprep.subr.mxu0 %v286
      %343 = vmatpush1.msra.mxu0 %v285
      %344 = vmatprep.subr.mxu0 0.0
      %345 = vmatpush1.msra.mxu0 0.0
      %346 = vmatprep.subr.mxu0 0.0
      %347 = vmatpush1.msra.mxu0 0.0
      %348 = vmatprep.subr.mxu0 0.0
      %349 = vmatpush1.msra.mxu0 0.0
      %350 = vmatprep.subr.mxu0 0.0
      %351 = vmatpush1.msra.mxu0 0.0
      %352 = vmatprep.subr.mxu0 0.0
      %353 = vmatpush1.msra.mxu0 0.0
      %354 = vmatprep.subr.mxu0 0.0
      %355 = vmatpush1.msra.mxu0 0.0
      %356 = vmatprep.subr.mxu0 0.0
      %357 = vmatpush1.msra.mxu0 0.0
      %358 = vmatprep.subr.mxu0 0.0
      %359 = vmatpush1.msra.mxu0 0.0
      %360 = vmatprep.subr.mxu0 0.0
      %361 = vmatpush1.msra.mxu0 0.0
      %362 = vmatprep.subr.mxu0 0.0
      %363 = vmatpush1.msra.mxu0 0.0
      %364 = vmatprep.subr.mxu0 0.0
      %365 = vmatpush1.msra.mxu0 0.0
      %366 = vmatprep.subr.mxu0 0.0
      %367 = vmatpush1.msra.mxu0 0.0
      %368 = vmatprep.subr.mxu0 0.0
      %369 = vmatpush1.msra.mxu0 0.0
      %370 = vmatprep.subr.mxu0 0.0
      %371 = vmatpush1.msra.mxu0 0.0
      %372 = vmatprep.subr.mxu0 0.0
      %373 = vmatpush1.msra.mxu0 0.0
      %374 = vmatprep.subr.mxu0 0.0
      %375 = vmatpush1.msra.mxu0 0.0
      %376 = vmatprep.subr.mxu0 0.0
      %377 = vmatpush1.msra.mxu0 0.0
      %378 = vmatprep.subr.mxu0 0.0
      %379 = vmatpush1.msra.mxu0 0.0
      %380 = vmatprep.subr.mxu0 0.0
      %381 = vmatpush1.msra.mxu0 0.0
      %382 = vmatprep.subr.mxu0 0.0
      %383 = vmatpush1.msra.mxu0 0.0
      %384 = vmatprep.subr.mxu0 0.0
      %385 = vmatpush1.msra.mxu0 0.0
      %386 = vmatprep.subr.mxu0 0.0
      %387 = vmatpush1.msra.mxu0 0.0
      %388 = vmatprep.subr.mxu0 0.0
      %389 = vmatpush1.msra.mxu0 0.0
      %390 = vmatprep.subr.mxu0 0.0
      %391 = vmatpush1.msra.mxu0 0.0
      %392 = vmatprep.subr.mxu0 0.0
      %393 = vmatpush1.msra.mxu0 0.0
      %394 = vmatprep.subr.mxu0 0.0
      %395 = vmatpush1.msra.mxu0 0.0
      %396 = vmatprep.subr.mxu0 0.0
      %397 = vmatpush1.msra.mxu0 0.0
      %398 = vmatprep.subr.mxu0 0.0
      %399 = vmatpush1.msra.mxu0 0.0
      %400 = vmatprep.mubr.f32.mxu0 0.0
      %401 = vmatmul.mubr.f32.gmra.mrb[0].mxu0 %v301
      %v402 = vpop.f32.mrb[0].mxu0
      %v403 = vadd.f32 0.0, %v402
      %v404 = vpop.f32.mrb[0].mxu0
      %v405 = vadd.f32 0.0, %v404
      %406 = vmatprep.mubr.f32.mxu0 0.0
      %407 = vmatmul.mubr.f32.gmra.mrb[0].mxu0 %v304
      %v408 = vpop.f32.mrb[0].mxu0
      %v409 = vadd.f32 0.0, %v408
      %v410 = vpop.f32.mrb[0].mxu0
      %v411 = vadd.f32 0.0, %v410
      %412 = vmatprep.mubr.f32.mxu0 0.0
      %413 = vmatmul.mubr.f32.gmra.mrb[0].mxu0 %v307
      %v414 = vpop.f32.mrb[0].mxu0
      %v415 = vadd.f32 0.0, %v414
      %v416 = vpop.f32.mrb[0].mxu0
      %v417 = vadd.f32 0.0, %v416
      %418 = vmatprep.mubr.f32.mxu0 0.0
      %419 = vmatmul.mubr.f32.gmra.mrb[0].mxu0 %v310
      %v420 = vpop.f32.mrb[0].mxu0
      %v421 = vadd.f32 0.0, %v420
      %v422 = vpop.f32.mrb[0].mxu0
      %v423 = vadd.f32 0.0, %v422
      %424 = vmatprep.mubr.f32.mxu0 0.0
      %425 = vmatmul.mubr.f32.gmra.mrb[0].mxu0 %v313
      %v426 = vpop.f32.mrb[0].mxu0
      %v427 = vadd.f32 0.0, %v426
      %v428 = vpop.f32.mrb[0].mxu0
      %v429 = vadd.f32 0.0, %v428
      %430 = vmatprep.mubr.f32.mxu0 0.0
      %431 = vmatmul.mubr.f32.gmra.mrb[0].mxu0 %v316
      %v432 = vpop.f32.mrb[0].mxu0
      %v433 = vadd.f32 0.0, %v432
      %v434 = vpop.f32.mrb[0].mxu0
      %v435 = vadd.f32 0.0, %v434
      %436 = vmatprep.mubr.f32.mxu0 0.0
      %437 = vmatmul.mubr.f32.gmra.mrb[0].mxu0 %v319
      %v438 = vpop.f32.mrb[0].mxu0
      %v439 = vadd.f32 0.0, %v438
      %v440 = vpop.f32.mrb[0].mxu0
      %v441 = vadd.f32 0.0, %v440
      %442 = vmatprep.mubr.f32.mxu0 0.0
      %443 = vmatmul.mubr.f32.gmra.mrb[0].mxu0 %v322
      %v444 = vpop.f32.mrb[0].mxu0
      %v445 = vadd.f32 0.0, %v444
      %v446 = vpop.f32.mrb[0].mxu0
      %v447 = vadd.f32 0.0, %v446
      %448 = vmatprep.mubr.f32.mxu0 0.0
      %449 = vmatmul.mubr.f32.gmra.mrb[0].mxu0 %v325
      %v450 = vpop.f32.mrb[0].mxu0
      %v451 = vadd.f32 0.0, %v450
      %v452 = vpop.f32.mrb[0].mxu0
      %v453 = vadd.f32 0.0, %v452
      %454 = vmatprep.mubr.f32.mxu0 0.0
      %455 = vmatmul.mubr.f32.gmra.mrb[0].mxu0 %v328
      %v456 = vpop.f32.mrb[0].mxu0
      %v457 = vadd.f32 0.0, %v456
      %v458 = vpop.f32.mrb[0].mxu0
      %v459 = vadd.f32 0.0, %v458
      %460 = vmatprep.mubr.f32.mxu0 0.0
      %461 = vmatmul.mubr.f32.gmra.mrb[0].mxu0 %v331
      %v462 = vpop.f32.mrb[0].mxu0
      %v463 = vadd.f32 0.0, %v462
      %v464 = vpop.f32.mrb[0].mxu0
      %v465 = vadd.f32 0.0, %v464
      %466 = vmatprep.mubr.f32.mxu0 0.0
      %467 = vmatmul.mubr.f32.gmra.mrb[0].mxu0 %v334
      %v468 = vpop.f32.mrb[0].mxu0
      %v469 = vadd.f32 0.0, %v468
      %v470 = vpop.f32.mrb[0].mxu0
      %v471 = vadd.f32 0.0, %v470
      %472 = vdwg.mxu0
      %473 = vrot.lane.b32.xlu0 %v403, 17
      %v474 = vpop.permute.xlu0 %473
      %475 = vrot.lane.b32.xlu0 %v409, 17
      %v476 = vpop.permute.xlu0 %475
      %477 = vrot.lane.b32.xlu0 %v415, 17
      %v478 = vpop.permute.xlu0 %477
      %479 = vrot.lane.b32.xlu0 %v421, 17
      %v480 = vpop.permute.xlu0 %479
      %481 = vrot.lane.b32.xlu0 %v427, 17
      %v482 = vpop.permute.xlu0 %481
      %483 = vrot.lane.b32.xlu0 %v433, 17
      %v484 = vpop.permute.xlu0 %483
      %485 = vrot.lane.b32.xlu0 %v439, 17
      %v486 = vpop.permute.xlu0 %485
      %487 = vrot.lane.b32.xlu0 %v445, 17
      %v488 = vpop.permute.xlu0 %487
      %489 = vrot.lane.b32.xlu0 %v451, 17
      %v490 = vpop.permute.xlu0 %489
      %491 = vrot.lane.b32.xlu0 %v457, 17
      %v492 = vpop.permute.xlu0 %491
      %493 = vrot.lane.b32.xlu0 %v463, 17
      %v494 = vpop.permute.xlu0 %493
      %495 = vrot.lane.b32.xlu0 %v469, 17
      %v496 = vpop.permute.xlu0 %495
      %497 = vrot.lane.b32.xlu0 %v405, 17
      %v498 = vpop.permute.xlu0 %497
      %499 = vrot.lane.b32.xlu0 %v411, 17
      %v500 = vpop.permute.xlu0 %499
      %501 = vrot.lane.b32.xlu0 %v417, 17
      %v502 = vpop.permute.xlu0 %501
      %503 = vrot.lane.b32.xlu0 %v423, 17
      %v504 = vpop.permute.xlu0 %503
      %505 = vrot.lane.b32.xlu0 %v429, 17
      %v506 = vpop.permute.xlu0 %505
      %507 = vrot.lane.b32.xlu0 %v435, 17
      %v508 = vpop.permute.xlu0 %507
      %509 = vrot.lane.b32.xlu0 %v441, 17
      %v510 = vpop.permute.xlu0 %509
      %511 = vrot.lane.b32.xlu0 %v447, 17
      %v512 = vpop.permute.xlu0 %511
      %513 = vrot.lane.b32.xlu0 %v453, 17
      %v514 = vpop.permute.xlu0 %513
      %515 = vrot.lane.b32.xlu0 %v459, 17
      %v516 = vpop.permute.xlu0 %515
      %517 = vrot.lane.b32.xlu0 %v465, 17
      %v518 = vpop.permute.xlu0 %517
      %519 = vrot.lane.b32.xlu0 %v471, 17
      %v520 = vpop.permute.xlu0 %519
      %v521 = vlaneseq
      %v522 = vand.u32 %v521, 127
      %vm523 = vcmp.lt.s32.totalorder %v522, 17
      %v524 = vsel %vm523, %v474, %v498
      %v525 = vsel %vm523, %v476, %v500
      %v526 = vsel %vm523, %v478, %v502
      %v527 = vsel %vm523, %v480, %v504
      %v528 = vsel %vm523, %v482, %v506
      %v529 = vsel %vm523, %v484, %v508
      %v530 = vsel %vm523, %v486, %v510
      %v531 = vsel %vm523, %v488, %v512
      %v532 = vsel %vm523, %v490, %v514
      %v533 = vsel %vm523, %v492, %v516
      %v534 = vsel %vm523, %v494, %v518
      %v535 = vsel %vm523, %v496, %v520
      %v536 = vsel %vm523, %v498, %v474
      %v537 = vsel %vm523, %v500, %v476
      %v538 = vsel %vm523, %v502, %v478
      %v539 = vsel %vm523, %v504, %v480
      %v540 = vsel %vm523, %v506, %v482
      %v541 = vsel %vm523, %v508, %v484
      %v542 = vsel %vm523, %v510, %v486
      %v543 = vsel %vm523, %v512, %v488
      %v544 = vsel %vm523, %v514, %v490
      %v545 = vsel %vm523, %v516, %v492
      %v546 = vsel %vm523, %v518, %v494
      %v547 = vsel %vm523, %v520, %v496
      %v548 = vld [vmem:[%s3] sm:$0x3]
      %v550 = vlaneseq
      %v551 = vshrl.u32 %v550, 7
      %v552 = vsub.s32 0, %v551
      %v553 = vrot.slane %v548, %v552
      %v554 = vlaneseq
      %v555 = vshrl.u32 %v554, 7
      %v556 = vsub.s32 1, %v555
      %v557 = vrot.slane %v548, %v556
      %v560 = vmul.f32 %v536, %v553
      %v561 = vmul.f32 %v524, %v557
      %v562 = vmul.f32 %v537, %v553
      %v563 = vmul.f32 %v525, %v557
      %v564 = vmul.f32 %v538, %v553
      %v565 = vmul.f32 %v526, %v557
      %v566 = vmul.f32 %v539, %v553
      %v567 = vmul.f32 %v527, %v557
      %v568 = vmul.f32 %v540, %v553
      %v569 = vmul.f32 %v528, %v557
      %v570 = vmul.f32 %v541, %v553
      %v571 = vmul.f32 %v529, %v557
      %v572 = vmul.f32 %v542, %v553
      %v573 = vmul.f32 %v530, %v557
      %v574 = vmul.f32 %v543, %v553
      %v575 = vmul.f32 %v531, %v557
      %v576 = vmul.f32 %v544, %v553
      %v577 = vmul.f32 %v532, %v557
      %v578 = vmul.f32 %v545, %v553
      %v579 = vmul.f32 %v533, %v557
      %v580 = vmul.f32 %v546, %v553
      %v581 = vmul.f32 %v534, %v557
      %v582 = vmul.f32 %v547, %v553
      %v583 = vmul.f32 %v535, %v557
      %v584 = vld [vmem:[%s2] sm:$0xff]
      %v585 = vld [vmem:[%s2 + $0x8] sm:$0xff]
      %v586 = vld [vmem:[%s2 + $0x10] sm:$0xff]
      %v587 = vld [vmem:[%s2 + $0x18] sm:$0xff]
      %v588 = vld [vmem:[%s2 + $0x20] sm:$0xff]
      %v589 = vld [vmem:[%s2 + $0x28] sm:$0xff]
      %v590 = vld [vmem:[%s2 + $0x30] sm:$0xff]
      %v591 = vld [vmem:[%s2 + $0x38] sm:$0xff]
      %v592 = vld [vmem:[%s2 + $0x40] sm:$0xff]
      %v593 = vld [vmem:[%s2 + $0x48] sm:$0xff]
      %v594 = vld [vmem:[%s2 + $0x50] sm:$0xff]
      %v595 = vld [vmem:[%s2 + $0x58] sm:$0xff]
      %597 = vset.pattern.permute.xlu0 0
      %598 = vperm.xlu0 %597, %v584
      %v599 = vpop.permute.xlu0 %598
      %602 = vset.pattern.permute.xlu0 0
      %603 = vperm.xlu0 %602, %v585
      %v604 = vpop.permute.xlu0 %603
      %607 = vset.pattern.permute.xlu0 0
      %608 = vperm.xlu0 %607, %v586
      %v609 = vpop.permute.xlu0 %608
      %612 = vset.pattern.permute.xlu0 0
      %613 = vperm.xlu0 %612, %v587
      %v614 = vpop.permute.xlu0 %613
      %617 = vset.pattern.permute.xlu0 0
      %618 = vperm.xlu0 %617, %v588
      %v619 = vpop.permute.xlu0 %618
      %622 = vset.pattern.permute.xlu0 0
      %623 = vperm.xlu0 %622, %v589
      %v624 = vpop.permute.xlu0 %623
      %627 = vset.pattern.permute.xlu0 0
      %628 = vperm.xlu0 %627, %v590
      %v629 = vpop.permute.xlu0 %628
      %632 = vset.pattern.permute.xlu0 0
      %633 = vperm.xlu0 %632, %v591
      %v634 = vpop.permute.xlu0 %633
      %637 = vset.pattern.permute.xlu0 0
      %638 = vperm.xlu0 %637, %v592
      %v639 = vpop.permute.xlu0 %638
      %642 = vset.pattern.permute.xlu0 0
      %643 = vperm.xlu0 %642, %v593
      %v644 = vpop.permute.xlu0 %643
      %647 = vset.pattern.permute.xlu0 0
      %648 = vperm.xlu0 %647, %v594
      %v649 = vpop.permute.xlu0 %648
      %652 = vset.pattern.permute.xlu0 0
      %653 = vperm.xlu0 %652, %v595
      %v654 = vpop.permute.xlu0 %653
      %v656 = vmul.f32 %v560, %v599
      %v657 = vmul.f32 %v561, %v599
      %v658 = vmul.f32 %v562, %v604
      %v659 = vmul.f32 %v563, %v604
      %v660 = vmul.f32 %v564, %v609
      %v661 = vmul.f32 %v565, %v609
      %v662 = vmul.f32 %v566, %v614
      %v663 = vmul.f32 %v567, %v614
      %v664 = vmul.f32 %v568, %v619
      %v665 = vmul.f32 %v569, %v619
      %v666 = vmul.f32 %v570, %v624
      %v667 = vmul.f32 %v571, %v624
      %v668 = vmul.f32 %v572, %v629
      %v669 = vmul.f32 %v573, %v629
      %v670 = vmul.f32 %v574, %v634
      %v671 = vmul.f32 %v575, %v634
      %v672 = vmul.f32 %v576, %v639
      %v673 = vmul.f32 %v577, %v639
      %v674 = vmul.f32 %v578, %v644
      %v675 = vmul.f32 %v579, %v644
      %v676 = vmul.f32 %v580, %v649
      %v677 = vmul.f32 %v581, %v649
      %v678 = vmul.f32 %v582, %v654
      %v679 = vmul.f32 %v583, %v654
      %v680 = vadd.f32 %v656, 0.0
      %v681 = vadd.f32 %v657, 0.0
      %v682 = vadd.f32 %v658, 0.0
      %v683 = vadd.f32 %v659, 0.0
      %v684 = vadd.f32 %v660, 0.0
      %v685 = vadd.f32 %v661, 0.0
      %v686 = vadd.f32 %v662, 0.0
      %v687 = vadd.f32 %v663, 0.0
      %v688 = vadd.f32 %v664, 0.0
      %v689 = vadd.f32 %v665, 0.0
      %v690 = vadd.f32 %v666, 0.0
      %v691 = vadd.f32 %v667, 0.0
      %v692 = vadd.f32 %v668, 0.0
      %v693 = vadd.f32 %v669, 0.0
      %v694 = vadd.f32 %v670, 0.0
      %v695 = vadd.f32 %v671, 0.0
      %v696 = vadd.f32 %v672, 0.0
      %v697 = vadd.f32 %v673, 0.0
      %v698 = vadd.f32 %v674, 0.0
      %v699 = vadd.f32 %v675, 0.0
      %v700 = vadd.f32 %v676, 0.0
      %v701 = vadd.f32 %v677, 0.0
      %v702 = vadd.f32 %v678, 0.0
      %v703 = vadd.f32 %v679, 0.0
      %704 = vrot.lane.b32.xlu0 %v403, 16
      %v705 = vpop.permute.xlu0 %704
      %706 = vrot.lane.b32.xlu0 %v409, 16
      %v707 = vpop.permute.xlu0 %706
      %708 = vrot.lane.b32.xlu0 %v415, 16
      %v709 = vpop.permute.xlu0 %708
      %710 = vrot.lane.b32.xlu0 %v421, 16
      %v711 = vpop.permute.xlu0 %710
      %712 = vrot.lane.b32.xlu0 %v427, 16
      %v713 = vpop.permute.xlu0 %712
      %714 = vrot.lane.b32.xlu0 %v433, 16
      %v715 = vpop.permute.xlu0 %714
      %716 = vrot.lane.b32.xlu0 %v439, 16
      %v717 = vpop.permute.xlu0 %716
      %718 = vrot.lane.b32.xlu0 %v445, 16
      %v719 = vpop.permute.xlu0 %718
      %720 = vrot.lane.b32.xlu0 %v451, 16
      %v721 = vpop.permute.xlu0 %720
      %722 = vrot.lane.b32.xlu0 %v457, 16
      %v723 = vpop.permute.xlu0 %722
      %724 = vrot.lane.b32.xlu0 %v463, 16
      %v725 = vpop.permute.xlu0 %724
      %726 = vrot.lane.b32.xlu0 %v469, 16
      %v727 = vpop.permute.xlu0 %726
      %728 = vrot.lane.b32.xlu0 %v405, 16
      %v729 = vpop.permute.xlu0 %728
      %730 = vrot.lane.b32.xlu0 %v411, 16
      %v731 = vpop.permute.xlu0 %730
      %732 = vrot.lane.b32.xlu0 %v417, 16
      %v733 = vpop.permute.xlu0 %732
      %734 = vrot.lane.b32.xlu0 %v423, 16
      %v735 = vpop.permute.xlu0 %734
      %736 = vrot.lane.b32.xlu0 %v429, 16
      %v737 = vpop.permute.xlu0 %736
      %738 = vrot.lane.b32.xlu0 %v435, 16
      %v739 = vpop.permute.xlu0 %738
      %740 = vrot.lane.b32.xlu0 %v441, 16
      %v741 = vpop.permute.xlu0 %740
      %742 = vrot.lane.b32.xlu0 %v447, 16
      %v743 = vpop.permute.xlu0 %742
      %744 = vrot.lane.b32.xlu0 %v453, 16
      %v745 = vpop.permute.xlu0 %744
      %746 = vrot.lane.b32.xlu0 %v459, 16
      %v747 = vpop.permute.xlu0 %746
      %748 = vrot.lane.b32.xlu0 %v465, 16
      %v749 = vpop.permute.xlu0 %748
      %750 = vrot.lane.b32.xlu0 %v471, 16
      %v751 = vpop.permute.xlu0 %750
      %vm752 = vcmp.lt.s32.totalorder %v522, 16
      %v753 = vsel %vm752, %v705, %v729
      %v754 = vsel %vm752, %v707, %v731
      %v755 = vsel %vm752, %v709, %v733
      %v756 = vsel %vm752, %v711, %v735
      %v757 = vsel %vm752, %v713, %v737
      %v758 = vsel %vm752, %v715, %v739
      %v759 = vsel %vm752, %v717, %v741
      %v760 = vsel %vm752, %v719, %v743
      %v761 = vsel %vm752, %v721, %v745
      %v762 = vsel %vm752, %v723, %v747
      %v763 = vsel %vm752, %v725, %v749
      %v764 = vsel %vm752, %v727, %v751
      %v765 = vsel %vm752, %v729, %v705
      %v766 = vsel %vm752, %v731, %v707
      %v767 = vsel %vm752, %v733, %v709
      %v768 = vsel %vm752, %v735, %v711
      %v769 = vsel %vm752, %v737, %v713
      %v770 = vsel %vm752, %v739, %v715
      %v771 = vsel %vm752, %v741, %v717
      %v772 = vsel %vm752, %v743, %v719
      %v773 = vsel %vm752, %v745, %v721
      %v774 = vsel %vm752, %v747, %v723
      %v775 = vsel %vm752, %v749, %v725
      %v776 = vsel %vm752, %v751, %v727
      %s777 = scalar_lea.vmem %s3, 2
      %v778 = vld [vmem:[%s777] sm:$0x3]
      %v780 = vlaneseq
      %v781 = vshrl.u32 %v780, 7
      %v782 = vsub.s32 0, %v781
      %v783 = vrot.slane %v778, %v782
      %v784 = vlaneseq
      %v785 = vshrl.u32 %v784, 7
      %v786 = vsub.s32 1, %v785
      %v787 = vrot.slane %v778, %v786
      %v790 = vmul.f32 %v765, %v783
      %v791 = vmul.f32 %v753, %v787
      %v792 = vmul.f32 %v766, %v783
      %v793 = vmul.f32 %v754, %v787
      %v794 = vmul.f32 %v767, %v783
      %v795 = vmul.f32 %v755, %v787
      %v796 = vmul.f32 %v768, %v783
      %v797 = vmul.f32 %v756, %v787
      %v798 = vmul.f32 %v769, %v783
      %v799 = vmul.f32 %v757, %v787
      %v800 = vmul.f32 %v770, %v783
      %v801 = vmul.f32 %v758, %v787
      %v802 = vmul.f32 %v771, %v783
      %v803 = vmul.f32 %v759, %v787
      %v804 = vmul.f32 %v772, %v783
      %v805 = vmul.f32 %v760, %v787
      %v806 = vmul.f32 %v773, %v783
      %v807 = vmul.f32 %v761, %v787
      %v808 = vmul.f32 %v774, %v783
      %v809 = vmul.f32 %v762, %v787
      %v810 = vmul.f32 %v775, %v783
      %v811 = vmul.f32 %v763, %v787
      %v812 = vmul.f32 %v776, %v783
      %v813 = vmul.f32 %v764, %v787
      %s814 = scalar_lea.vmem %s2, 96
      %v815 = vld [vmem:[%s814] sm:$0xff]
      %v816 = vld [vmem:[%s814 + $0x8] sm:$0xff]
      %v817 = vld [vmem:[%s814 + $0x10] sm:$0xff]
      %v818 = vld [vmem:[%s814 + $0x18] sm:$0xff]
      %v819 = vld [vmem:[%s814 + $0x20] sm:$0xff]
      %v820 = vld [vmem:[%s814 + $0x28] sm:$0xff]
      %v821 = vld [vmem:[%s814 + $0x30] sm:$0xff]
      %v822 = vld [vmem:[%s814 + $0x38] sm:$0xff]
      %v823 = vld [vmem:[%s814 + $0x40] sm:$0xff]
      %v824 = vld [vmem:[%s814 + $0x48] sm:$0xff]
      %v825 = vld [vmem:[%s814 + $0x50] sm:$0xff]
      %v826 = vld [vmem:[%s814 + $0x58] sm:$0xff]
      %828 = vset.pattern.permute.xlu0 0
      %829 = vperm.xlu0 %828, %v815
      %v830 = vpop.permute.xlu0 %829
      %833 = vset.pattern.permute.xlu0 0
      %834 = vperm.xlu0 %833, %v816
      %v835 = vpop.permute.xlu0 %834
      %838 = vset.pattern.permute.xlu0 0
      %839 = vperm.xlu0 %838, %v817
      %v840 = vpop.permute.xlu0 %839
      %843 = vset.pattern.permute.xlu0 0
      %844 = vperm.xlu0 %843, %v818
      %v845 = vpop.permute.xlu0 %844
      %848 = vset.pattern.permute.xlu0 0
      %849 = vperm.xlu0 %848, %v819
      %v850 = vpop.permute.xlu0 %849
      %853 = vset.pattern.permute.xlu0 0
      %854 = vperm.xlu0 %853, %v820
      %v855 = vpop.permute.xlu0 %854
      %858 = vset.pattern.permute.xlu0 0
      %859 = vperm.xlu0 %858, %v821
      %v860 = vpop.permute.xlu0 %859
      %863 = vset.pattern.permute.xlu0 0
      %864 = vperm.xlu0 %863, %v822
      %v865 = vpop.permute.xlu0 %864
      %868 = vset.pattern.permute.xlu0 0
      %869 = vperm.xlu0 %868, %v823
      %v870 = vpop.permute.xlu0 %869
      %873 = vset.pattern.permute.xlu0 0
      %874 = vperm.xlu0 %873, %v824
      %v875 = vpop.permute.xlu0 %874
      %878 = vset.pattern.permute.xlu0 0
      %879 = vperm.xlu0 %878, %v825
      %v880 = vpop.permute.xlu0 %879
      %883 = vset.pattern.permute.xlu0 0
      %884 = vperm.xlu0 %883, %v826
      %v885 = vpop.permute.xlu0 %884
      %v887 = vmul.f32 %v790, %v830
      %v888 = vmul.f32 %v791, %v830
      %v889 = vmul.f32 %v792, %v835
      %v890 = vmul.f32 %v793, %v835
      %v891 = vmul.f32 %v794, %v840
      %v892 = vmul.f32 %v795, %v840
      %v893 = vmul.f32 %v796, %v845
      %v894 = vmul.f32 %v797, %v845
      %v895 = vmul.f32 %v798, %v850
      %v896 = vmul.f32 %v799, %v850
      %v897 = vmul.f32 %v800, %v855
      %v898 = vmul.f32 %v801, %v855
      %v899 = vmul.f32 %v802, %v860
      %v900 = vmul.f32 %v803, %v860
      %v901 = vmul.f32 %v804, %v865
      %v902 = vmul.f32 %v805, %v865
      %v903 = vmul.f32 %v806, %v870
      %v904 = vmul.f32 %v807, %v870
      %v905 = vmul.f32 %v808, %v875
      %v906 = vmul.f32 %v809, %v875
      %v907 = vmul.f32 %v810, %v880
      %v908 = vmul.f32 %v811, %v880
      %v909 = vmul.f32 %v812, %v885
      %v910 = vmul.f32 %v813, %v885
      %v911 = vadd.f32 %v680, %v887
      %v912 = vadd.f32 %v681, %v888
      %v913 = vadd.f32 %v682, %v889
      %v914 = vadd.f32 %v683, %v890
      %v915 = vadd.f32 %v684, %v891
      %v916 = vadd.f32 %v685, %v892
      %v917 = vadd.f32 %v686, %v893
      %v918 = vadd.f32 %v687, %v894
      %v919 = vadd.f32 %v688, %v895
      %v920 = vadd.f32 %v689, %v896
      %v921 = vadd.f32 %v690, %v897
      %v922 = vadd.f32 %v691, %v898
      %v923 = vadd.f32 %v692, %v899
      %v924 = vadd.f32 %v693, %v900
      %v925 = vadd.f32 %v694, %v901
      %v926 = vadd.f32 %v695, %v902
      %v927 = vadd.f32 %v696, %v903
      %v928 = vadd.f32 %v697, %v904
      %v929 = vadd.f32 %v698, %v905
      %v930 = vadd.f32 %v699, %v906
      %v931 = vadd.f32 %v700, %v907
      %v932 = vadd.f32 %v701, %v908
      %v933 = vadd.f32 %v702, %v909
      %v934 = vadd.f32 %v703, %v910
      %935 = vrot.lane.b32.xlu0 %v403, 15
      %v936 = vpop.permute.xlu0 %935
      %937 = vrot.lane.b32.xlu0 %v409, 15
      %v938 = vpop.permute.xlu0 %937
      %939 = vrot.lane.b32.xlu0 %v415, 15
      %v940 = vpop.permute.xlu0 %939
      %941 = vrot.lane.b32.xlu0 %v421, 15
      %v942 = vpop.permute.xlu0 %941
      %943 = vrot.lane.b32.xlu0 %v427, 15
      %v944 = vpop.permute.xlu0 %943
      %945 = vrot.lane.b32.xlu0 %v433, 15
      %v946 = vpop.permute.xlu0 %945
      %947 = vrot.lane.b32.xlu0 %v439, 15
      %v948 = vpop.permute.xlu0 %947
      %949 = vrot.lane.b32.xlu0 %v445, 15
      %v950 = vpop.permute.xlu0 %949
      %951 = vrot.lane.b32.xlu0 %v451, 15
      %v952 = vpop.permute.xlu0 %951
      %953 = vrot.lane.b32.xlu0 %v457, 15
      %v954 = vpop.permute.xlu0 %953
      %955 = vrot.lane.b32.xlu0 %v463, 15
      %v956 = vpop.permute.xlu0 %955
      %957 = vrot.lane.b32.xlu0 %v469, 15
      %v958 = vpop.permute.xlu0 %957
      %959 = vrot.lane.b32.xlu0 %v405, 15
      %v960 = vpop.permute.xlu0 %959
      %961 = vrot.lane.b32.xlu0 %v411, 15
      %v962 = vpop.permute.xlu0 %961
      %963 = vrot.lane.b32.xlu0 %v417, 15
      %v964 = vpop.permute.xlu0 %963
      %965 = vrot.lane.b32.xlu0 %v423, 15
      %v966 = vpop.permute.xlu0 %965
      %967 = vrot.lane.b32.xlu0 %v429, 15
      %v968 = vpop.permute.xlu0 %967
      %969 = vrot.lane.b32.xlu0 %v435, 15
      %v970 = vpop.permute.xlu0 %969
      %971 = vrot.lane.b32.xlu0 %v441, 15
      %v972 = vpop.permute.xlu0 %971
      %973 = vrot.lane.b32.xlu0 %v447, 15
      %v974 = vpop.permute.xlu0 %973
      %975 = vrot.lane.b32.xlu0 %v453, 15
      %v976 = vpop.permute.xlu0 %975
      %977 = vrot.lane.b32.xlu0 %v459, 15
      %v978 = vpop.permute.xlu0 %977
      %979 = vrot.lane.b32.xlu0 %v465, 15
      %v980 = vpop.permute.xlu0 %979
      %981 = vrot.lane.b32.xlu0 %v471, 15
      %v982 = vpop.permute.xlu0 %981
      %vm983 = vcmp.lt.s32.totalorder %v522, 15
      %v984 = vsel %vm983, %v936, %v960
      %v985 = vsel %vm983, %v938, %v962
      %v986 = vsel %vm983, %v940, %v964
      %v987 = vsel %vm983, %v942, %v966
      %v988 = vsel %vm983, %v944, %v968
      %v989 = vsel %vm983, %v946, %v970
      %v990 = vsel %vm983, %v948, %v972
      %v991 = vsel %vm983, %v950, %v974
      %v992 = vsel %vm983, %v952, %v976
      %v993 = vsel %vm983, %v954, %v978
      %v994 = vsel %vm983, %v956, %v980
      %v995 = vsel %vm983, %v958, %v982
      %v996 = vsel %vm983, %v960, %v936
      %v997 = vsel %vm983, %v962, %v938
      %v998 = vsel %vm983, %v964, %v940
      %v999 = vsel %vm983, %v966, %v942
      %v1000 = vsel %vm983, %v968, %v944
      %v1001 = vsel %vm983, %v970, %v946
      %v1002 = vsel %vm983, %v972, %v948
      %v1003 = vsel %vm983, %v974, %v950
      %v1004 = vsel %vm983, %v976, %v952
      %v1005 = vsel %vm983, %v978, %v954
      %v1006 = vsel %vm983, %v980, %v956
      %v1007 = vsel %vm983, %v982, %v958
      %s1008 = scalar_lea.vmem %s3, 4
      %v1009 = vld [vmem:[%s1008] sm:$0x3]
      %v1011 = vlaneseq
      %v1012 = vshrl.u32 %v1011, 7
      %v1013 = vsub.s32 0, %v1012
      %v1014 = vrot.slane %v1009, %v1013
      %v1015 = vlaneseq
      %v1016 = vshrl.u32 %v1015, 7
      %v1017 = vsub.s32 1, %v1016
      %v1018 = vrot.slane %v1009, %v1017
      %v1021 = vmul.f32 %v996, %v1014
      %v1022 = vmul.f32 %v984, %v1018
      %v1023 = vmul.f32 %v997, %v1014
      %v1024 = vmul.f32 %v985, %v1018
      %v1025 = vmul.f32 %v998, %v1014
      %v1026 = vmul.f32 %v986, %v1018
      %v1027 = vmul.f32 %v999, %v1014
      %v1028 = vmul.f32 %v987, %v1018
      %v1029 = vmul.f32 %v1000, %v1014
      %v1030 = vmul.f32 %v988, %v1018
      %v1031 = vmul.f32 %v1001, %v1014
      %v1032 = vmul.f32 %v989, %v1018
      %v1033 = vmul.f32 %v1002, %v1014
      %v1034 = vmul.f32 %v990, %v1018
      %v1035 = vmul.f32 %v1003, %v1014
      %v1036 = vmul.f32 %v991, %v1018
      %v1037 = vmul.f32 %v1004, %v1014
      %v1038 = vmul.f32 %v992, %v1018
      %v1039 = vmul.f32 %v1005, %v1014
      %v1040 = vmul.f32 %v993, %v1018
      %v1041 = vmul.f32 %v1006, %v1014
      %v1042 = vmul.f32 %v994, %v1018
      %v1043 = vmul.f32 %v1007, %v1014
      %v1044 = vmul.f32 %v995, %v1018
      %s1045 = scalar_lea.vmem %s2, 192
      %v1046 = vld [vmem:[%s1045] sm:$0xff]
      %v1047 = vld [vmem:[%s1045 + $0x8] sm:$0xff]
      %v1048 = vld [vmem:[%s1045 + $0x10] sm:$0xff]
      %v1049 = vld [vmem:[%s1045 + $0x18] sm:$0xff]
      %v1050 = vld [vmem:[%s1045 + $0x20] sm:$0xff]
      %v1051 = vld [vmem:[%s1045 + $0x28] sm:$0xff]
      %v1052 = vld [vmem:[%s1045 + $0x30] sm:$0xff]
      %v1053 = vld [vmem:[%s1045 + $0x38] sm:$0xff]
      %v1054 = vld [vmem:[%s1045 + $0x40] sm:$0xff]
      %v1055 = vld [vmem:[%s1045 + $0x48] sm:$0xff]
      %v1056 = vld [vmem:[%s1045 + $0x50] sm:$0xff]
      %v1057 = vld [vmem:[%s1045 + $0x58] sm:$0xff]
      %1059 = vset.pattern.permute.xlu0 0
      %1060 = vperm.xlu0 %1059, %v1046
      %v1061 = vpop.permute.xlu0 %1060
      %1064 = vset.pattern.permute.xlu0 0
      %1065 = vperm.xlu0 %1064, %v1047
      %v1066 = vpop.permute.xlu0 %1065
      %1069 = vset.pattern.permute.xlu0 0
      %1070 = vperm.xlu0 %1069, %v1048
      %v1071 = vpop.permute.xlu0 %1070
      %1074 = vset.pattern.permute.xlu0 0
      %1075 = vperm.xlu0 %1074, %v1049
      %v1076 = vpop.permute.xlu0 %1075
      %1079 = vset.pattern.permute.xlu0 0
      %1080 = vperm.xlu0 %1079, %v1050
      %v1081 = vpop.permute.xlu0 %1080
      %1084 = vset.pattern.permute.xlu0 0
      %1085 = vperm.xlu0 %1084, %v1051
      %v1086 = vpop.permute.xlu0 %1085
      %1089 = vset.pattern.permute.xlu0 0
      %1090 = vperm.xlu0 %1089, %v1052
      %v1091 = vpop.permute.xlu0 %1090
      %1094 = vset.pattern.permute.xlu0 0
      %1095 = vperm.xlu0 %1094, %v1053
      %v1096 = vpop.permute.xlu0 %1095
      %1099 = vset.pattern.permute.xlu0 0
      %1100 = vperm.xlu0 %1099, %v1054
      %v1101 = vpop.permute.xlu0 %1100
      %1104 = vset.pattern.permute.xlu0 0
      %1105 = vperm.xlu0 %1104, %v1055
      %v1106 = vpop.permute.xlu0 %1105
      %1109 = vset.pattern.permute.xlu0 0
      %1110 = vperm.xlu0 %1109, %v1056
      %v1111 = vpop.permute.xlu0 %1110
      %1114 = vset.pattern.permute.xlu0 0
      %1115 = vperm.xlu0 %1114, %v1057
      %v1116 = vpop.permute.xlu0 %1115
      %v1118 = vmul.f32 %v1021, %v1061
      %v1119 = vmul.f32 %v1022, %v1061
      %v1120 = vmul.f32 %v1023, %v1066
      %v1121 = vmul.f32 %v1024, %v1066
      %v1122 = vmul.f32 %v1025, %v1071
      %v1123 = vmul.f32 %v1026, %v1071
      %v1124 = vmul.f32 %v1027, %v1076
      %v1125 = vmul.f32 %v1028, %v1076
      %v1126 = vmul.f32 %v1029, %v1081
      %v1127 = vmul.f32 %v1030, %v1081
      %v1128 = vmul.f32 %v1031, %v1086
      %v1129 = vmul.f32 %v1032, %v1086
      %v1130 = vmul.f32 %v1033, %v1091
      %v1131 = vmul.f32 %v1034, %v1091
      %v1132 = vmul.f32 %v1035, %v1096
      %v1133 = vmul.f32 %v1036, %v1096
      %v1134 = vmul.f32 %v1037, %v1101
      %v1135 = vmul.f32 %v1038, %v1101
      %v1136 = vmul.f32 %v1039, %v1106
      %v1137 = vmul.f32 %v1040, %v1106
      %v1138 = vmul.f32 %v1041, %v1111
      %v1139 = vmul.f32 %v1042, %v1111
      %v1140 = vmul.f32 %v1043, %v1116
      %v1141 = vmul.f32 %v1044, %v1116
      %v1142 = vadd.f32 %v911, %v1118
      %v1143 = vadd.f32 %v912, %v1119
      %v1144 = vadd.f32 %v913, %v1120
      %v1145 = vadd.f32 %v914, %v1121
      %v1146 = vadd.f32 %v915, %v1122
      %v1147 = vadd.f32 %v916, %v1123
      %v1148 = vadd.f32 %v917, %v1124
      %v1149 = vadd.f32 %v918, %v1125
      %v1150 = vadd.f32 %v919, %v1126
      %v1151 = vadd.f32 %v920, %v1127
      %v1152 = vadd.f32 %v921, %v1128
      %v1153 = vadd.f32 %v922, %v1129
      %v1154 = vadd.f32 %v923, %v1130
      %v1155 = vadd.f32 %v924, %v1131
      %v1156 = vadd.f32 %v925, %v1132
      %v1157 = vadd.f32 %v926, %v1133
      %v1158 = vadd.f32 %v927, %v1134
      %v1159 = vadd.f32 %v928, %v1135
      %v1160 = vadd.f32 %v929, %v1136
      %v1161 = vadd.f32 %v930, %v1137
      %v1162 = vadd.f32 %v931, %v1138
      %v1163 = vadd.f32 %v932, %v1139
      %v1164 = vadd.f32 %v933, %v1140
      %v1165 = vadd.f32 %v934, %v1141
      %1166 = vrot.lane.b32.xlu0 %v403, 1
      %v1167 = vpop.permute.xlu0 %1166
      %1168 = vrot.lane.b32.xlu0 %v409, 1
      %v1169 = vpop.permute.xlu0 %1168
      %1170 = vrot.lane.b32.xlu0 %v415, 1
      %v1171 = vpop.permute.xlu0 %1170
      %1172 = vrot.lane.b32.xlu0 %v421, 1
      %v1173 = vpop.permute.xlu0 %1172
      %1174 = vrot.lane.b32.xlu0 %v427, 1
      %v1175 = vpop.permute.xlu0 %1174
      %1176 = vrot.lane.b32.xlu0 %v433, 1
      %v1177 = vpop.permute.xlu0 %1176
      %1178 = vrot.lane.b32.xlu0 %v439, 1
      %v1179 = vpop.permute.xlu0 %1178
      %1180 = vrot.lane.b32.xlu0 %v445, 1
      %v1181 = vpop.permute.xlu0 %1180
      %1182 = vrot.lane.b32.xlu0 %v451, 1
      %v1183 = vpop.permute.xlu0 %1182
      %1184 = vrot.lane.b32.xlu0 %v457, 1
      %v1185 = vpop.permute.xlu0 %1184
      %1186 = vrot.lane.b32.xlu0 %v463, 1
      %v1187 = vpop.permute.xlu0 %1186
      %1188 = vrot.lane.b32.xlu0 %v469, 1
      %v1189 = vpop.permute.xlu0 %1188
      %1190 = vrot.lane.b32.xlu0 %v405, 1
      %v1191 = vpop.permute.xlu0 %1190
      %1192 = vrot.lane.b32.xlu0 %v411, 1
      %v1193 = vpop.permute.xlu0 %1192
      %1194 = vrot.lane.b32.xlu0 %v417, 1
      %v1195 = vpop.permute.xlu0 %1194
      %1196 = vrot.lane.b32.xlu0 %v423, 1
      %v1197 = vpop.permute.xlu0 %1196
      %1198 = vrot.lane.b32.xlu0 %v429, 1
      %v1199 = vpop.permute.xlu0 %1198
      %1200 = vrot.lane.b32.xlu0 %v435, 1
      %v1201 = vpop.permute.xlu0 %1200
      %1202 = vrot.lane.b32.xlu0 %v441, 1
      %v1203 = vpop.permute.xlu0 %1202
      %1204 = vrot.lane.b32.xlu0 %v447, 1
      %v1205 = vpop.permute.xlu0 %1204
      %1206 = vrot.lane.b32.xlu0 %v453, 1
      %v1207 = vpop.permute.xlu0 %1206
      %1208 = vrot.lane.b32.xlu0 %v459, 1
      %v1209 = vpop.permute.xlu0 %1208
      %1210 = vrot.lane.b32.xlu0 %v465, 1
      %v1211 = vpop.permute.xlu0 %1210
      %1212 = vrot.lane.b32.xlu0 %v471, 1
      %v1213 = vpop.permute.xlu0 %1212
      %vm1214 = vcmp.lt.s32.totalorder %v522, 1
      %v1215 = vsel %vm1214, %v1167, %v1191
      %v1216 = vsel %vm1214, %v1169, %v1193
      %v1217 = vsel %vm1214, %v1171, %v1195
      %v1218 = vsel %vm1214, %v1173, %v1197
      %v1219 = vsel %vm1214, %v1175, %v1199
      %v1220 = vsel %vm1214, %v1177, %v1201
      %v1221 = vsel %vm1214, %v1179, %v1203
      %v1222 = vsel %vm1214, %v1181, %v1205
      %v1223 = vsel %vm1214, %v1183, %v1207
      %v1224 = vsel %vm1214, %v1185, %v1209
      %v1225 = vsel %vm1214, %v1187, %v1211
      %v1226 = vsel %vm1214, %v1189, %v1213
      %v1227 = vsel %vm1214, %v1191, %v1167
      %v1228 = vsel %vm1214, %v1193, %v1169
      %v1229 = vsel %vm1214, %v1195, %v1171
      %v1230 = vsel %vm1214, %v1197, %v1173
      %v1231 = vsel %vm1214, %v1199, %v1175
      %v1232 = vsel %vm1214, %v1201, %v1177
      %v1233 = vsel %vm1214, %v1203, %v1179
      %v1234 = vsel %vm1214, %v1205, %v1181
      %v1235 = vsel %vm1214, %v1207, %v1183
      %v1236 = vsel %vm1214, %v1209, %v1185
      %v1237 = vsel %vm1214, %v1211, %v1187
      %v1238 = vsel %vm1214, %v1213, %v1189
      %s1239 = scalar_lea.vmem %s3, 6
      %v1240 = vld [vmem:[%s1239] sm:$0x3]
      %v1242 = vlaneseq
      %v1243 = vshrl.u32 %v1242, 7
      %v1244 = vsub.s32 0, %v1243
      %v1245 = vrot.slane %v1240, %v1244
      %v1246 = vlaneseq
      %v1247 = vshrl.u32 %v1246, 7
      %v1248 = vsub.s32 1, %v1247
      %v1249 = vrot.slane %v1240, %v1248
      %v1252 = vmul.f32 %v1227, %v1245
      %v1253 = vmul.f32 %v1215, %v1249
      %v1254 = vmul.f32 %v1228, %v1245
      %v1255 = vmul.f32 %v1216, %v1249
      %v1256 = vmul.f32 %v1229, %v1245
      %v1257 = vmul.f32 %v1217, %v1249
      %v1258 = vmul.f32 %v1230, %v1245
      %v1259 = vmul.f32 %v1218, %v1249
      %v1260 = vmul.f32 %v1231, %v1245
      %v1261 = vmul.f32 %v1219, %v1249
      %v1262 = vmul.f32 %v1232, %v1245
      %v1263 = vmul.f32 %v1220, %v1249
      %v1264 = vmul.f32 %v1233, %v1245
      %v1265 = vmul.f32 %v1221, %v1249
      %v1266 = vmul.f32 %v1234, %v1245
      %v1267 = vmul.f32 %v1222, %v1249
      %v1268 = vmul.f32 %v1235, %v1245
      %v1269 = vmul.f32 %v1223, %v1249
      %v1270 = vmul.f32 %v1236, %v1245
      %v1271 = vmul.f32 %v1224, %v1249
      %v1272 = vmul.f32 %v1237, %v1245
      %v1273 = vmul.f32 %v1225, %v1249
      %v1274 = vmul.f32 %v1238, %v1245
      %v1275 = vmul.f32 %v1226, %v1249
      %s1276 = scalar_lea.vmem %s2, 288
      %v1277 = vld [vmem:[%s1276] sm:$0xff]
      %v1278 = vld [vmem:[%s1276 + $0x8] sm:$0xff]
      %v1279 = vld [vmem:[%s1276 + $0x10] sm:$0xff]
      %v1280 = vld [vmem:[%s1276 + $0x18] sm:$0xff]
      %v1281 = vld [vmem:[%s1276 + $0x20] sm:$0xff]
      %v1282 = vld [vmem:[%s1276 + $0x28] sm:$0xff]
      %v1283 = vld [vmem:[%s1276 + $0x30] sm:$0xff]
      %v1284 = vld [vmem:[%s1276 + $0x38] sm:$0xff]
      %v1285 = vld [vmem:[%s1276 + $0x40] sm:$0xff]
      %v1286 = vld [vmem:[%s1276 + $0x48] sm:$0xff]
      %v1287 = vld [vmem:[%s1276 + $0x50] sm:$0xff]
      %v1288 = vld [vmem:[%s1276 + $0x58] sm:$0xff]
      %1290 = vset.pattern.permute.xlu0 0
      %1291 = vperm.xlu0 %1290, %v1277
      %v1292 = vpop.permute.xlu0 %1291
      %1295 = vset.pattern.permute.xlu0 0
      %1296 = vperm.xlu0 %1295, %v1278
      %v1297 = vpop.permute.xlu0 %1296
      %1300 = vset.pattern.permute.xlu0 0
      %1301 = vperm.xlu0 %1300, %v1279
      %v1302 = vpop.permute.xlu0 %1301
      %1305 = vset.pattern.permute.xlu0 0
      %1306 = vperm.xlu0 %1305, %v1280
      %v1307 = vpop.permute.xlu0 %1306
      %1310 = vset.pattern.permute.xlu0 0
      %1311 = vperm.xlu0 %1310, %v1281
      %v1312 = vpop.permute.xlu0 %1311
      %1315 = vset.pattern.permute.xlu0 0
      %1316 = vperm.xlu0 %1315, %v1282
      %v1317 = vpop.permute.xlu0 %1316
      %1320 = vset.pattern.permute.xlu0 0
      %1321 = vperm.xlu0 %1320, %v1283
      %v1322 = vpop.permute.xlu0 %1321
      %1325 = vset.pattern.permute.xlu0 0
      %1326 = vperm.xlu0 %1325, %v1284
      %v1327 = vpop.permute.xlu0 %1326
      %1330 = vset.pattern.permute.xlu0 0
      %1331 = vperm.xlu0 %1330, %v1285
      %v1332 = vpop.permute.xlu0 %1331
      %1335 = vset.pattern.permute.xlu0 0
      %1336 = vperm.xlu0 %1335, %v1286
      %v1337 = vpop.permute.xlu0 %1336
      %1340 = vset.pattern.permute.xlu0 0
      %1341 = vperm.xlu0 %1340, %v1287
      %v1342 = vpop.permute.xlu0 %1341
      %1345 = vset.pattern.permute.xlu0 0
      %1346 = vperm.xlu0 %1345, %v1288
      %v1347 = vpop.permute.xlu0 %1346
      %v1349 = vmul.f32 %v1252, %v1292
      %v1350 = vmul.f32 %v1253, %v1292
      %v1351 = vmul.f32 %v1254, %v1297
      %v1352 = vmul.f32 %v1255, %v1297
      %v1353 = vmul.f32 %v1256, %v1302
      %v1354 = vmul.f32 %v1257, %v1302
      %v1355 = vmul.f32 %v1258, %v1307
      %v1356 = vmul.f32 %v1259, %v1307
      %v1357 = vmul.f32 %v1260, %v1312
      %v1358 = vmul.f32 %v1261, %v1312
      %v1359 = vmul.f32 %v1262, %v1317
      %v1360 = vmul.f32 %v1263, %v1317
      %v1361 = vmul.f32 %v1264, %v1322
      %v1362 = vmul.f32 %v1265, %v1322
      %v1363 = vmul.f32 %v1266, %v1327
      %v1364 = vmul.f32 %v1267, %v1327
      %v1365 = vmul.f32 %v1268, %v1332
      %v1366 = vmul.f32 %v1269, %v1332
      %v1367 = vmul.f32 %v1270, %v1337
      %v1368 = vmul.f32 %v1271, %v1337
      %v1369 = vmul.f32 %v1272, %v1342
      %v1370 = vmul.f32 %v1273, %v1342
      %v1371 = vmul.f32 %v1274, %v1347
      %v1372 = vmul.f32 %v1275, %v1347
      %v1373 = vadd.f32 %v1142, %v1349
      %v1374 = vadd.f32 %v1143, %v1350
      %v1375 = vadd.f32 %v1144, %v1351
      %v1376 = vadd.f32 %v1145, %v1352
      %v1377 = vadd.f32 %v1146, %v1353
      %v1378 = vadd.f32 %v1147, %v1354
      %v1379 = vadd.f32 %v1148, %v1355
      %v1380 = vadd.f32 %v1149, %v1356
      %v1381 = vadd.f32 %v1150, %v1357
      %v1382 = vadd.f32 %v1151, %v1358
      %v1383 = vadd.f32 %v1152, %v1359
      %v1384 = vadd.f32 %v1153, %v1360
      %v1385 = vadd.f32 %v1154, %v1361
      %v1386 = vadd.f32 %v1155, %v1362
      %v1387 = vadd.f32 %v1156, %v1363
      %v1388 = vadd.f32 %v1157, %v1364
      %v1389 = vadd.f32 %v1158, %v1365
      %v1390 = vadd.f32 %v1159, %v1366
      %v1391 = vadd.f32 %v1160, %v1367
      %v1392 = vadd.f32 %v1161, %v1368
      %v1393 = vadd.f32 %v1162, %v1369
      %v1394 = vadd.f32 %v1163, %v1370
      %v1395 = vadd.f32 %v1164, %v1371
      %v1396 = vadd.f32 %v1165, %v1372
      %s1397 = scalar_lea.vmem %s3, 8
      %v1398 = vld [vmem:[%s1397] sm:$0x3]
      %v1400 = vlaneseq
      %v1401 = vshrl.u32 %v1400, 7
      %v1402 = vsub.s32 0, %v1401
      %v1403 = vrot.slane %v1398, %v1402
      %v1404 = vlaneseq
      %v1405 = vshrl.u32 %v1404, 7
      %v1406 = vsub.s32 1, %v1405
      %v1407 = vrot.slane %v1398, %v1406
      %v1410 = vmul.f32 %v403, %v1403
      %v1411 = vmul.f32 %v405, %v1407
      %v1412 = vmul.f32 %v409, %v1403
      %v1413 = vmul.f32 %v411, %v1407
      %v1414 = vmul.f32 %v415, %v1403
      %v1415 = vmul.f32 %v417, %v1407
      %v1416 = vmul.f32 %v421, %v1403
      %v1417 = vmul.f32 %v423, %v1407
      %v1418 = vmul.f32 %v427, %v1403
      %v1419 = vmul.f32 %v429, %v1407
      %v1420 = vmul.f32 %v433, %v1403
      %v1421 = vmul.f32 %v435, %v1407
      %v1422 = vmul.f32 %v439, %v1403
      %v1423 = vmul.f32 %v441, %v1407
      %v1424 = vmul.f32 %v445, %v1403
      %v1425 = vmul.f32 %v447, %v1407
      %v1426 = vmul.f32 %v451, %v1403
      %v1427 = vmul.f32 %v453, %v1407
      %v1428 = vmul.f32 %v457, %v1403
      %v1429 = vmul.f32 %v459, %v1407
      %v1430 = vmul.f32 %v463, %v1403
      %v1431 = vmul.f32 %v465, %v1407
      %v1432 = vmul.f32 %v469, %v1403
      %v1433 = vmul.f32 %v471, %v1407
      %s1434 = scalar_lea.vmem %s2, 384
      %v1435 = vld [vmem:[%s1434] sm:$0xff]
      %v1436 = vld [vmem:[%s1434 + $0x8] sm:$0xff]
      %v1437 = vld [vmem:[%s1434 + $0x10] sm:$0xff]
      %v1438 = vld [vmem:[%s1434 + $0x18] sm:$0xff]
      %v1439 = vld [vmem:[%s1434 + $0x20] sm:$0xff]
      %v1440 = vld [vmem:[%s1434 + $0x28] sm:$0xff]
      %v1441 = vld [vmem:[%s1434 + $0x30] sm:$0xff]
      %v1442 = vld [vmem:[%s1434 + $0x38] sm:$0xff]
      %v1443 = vld [vmem:[%s1434 + $0x40] sm:$0xff]
      %v1444 = vld [vmem:[%s1434 + $0x48] sm:$0xff]
      %v1445 = vld [vmem:[%s1434 + $0x50] sm:$0xff]
      %v1446 = vld [vmem:[%s1434 + $0x58] sm:$0xff]
      %1448 = vset.pattern.permute.xlu0 0
      %1449 = vperm.xlu0 %1448, %v1435
      %v1450 = vpop.permute.xlu0 %1449
      %1453 = vset.pattern.permute.xlu0 0
      %1454 = vperm.xlu0 %1453, %v1436
      %v1455 = vpop.permute.xlu0 %1454
      %1458 = vset.pattern.permute.xlu0 0
      %1459 = vperm.xlu0 %1458, %v1437
      %v1460 = vpop.permute.xlu0 %1459
      %1463 = vset.pattern.permute.xlu0 0
      %1464 = vperm.xlu0 %1463, %v1438
      %v1465 = vpop.permute.xlu0 %1464
      %1468 = vset.pattern.permute.xlu0 0
      %1469 = vperm.xlu0 %1468, %v1439
      %v1470 = vpop.permute.xlu0 %1469
      %1473 = vset.pattern.permute.xlu0 0
      %1474 = vperm.xlu0 %1473, %v1440
      %v1475 = vpop.permute.xlu0 %1474
      %1478 = vset.pattern.permute.xlu0 0
      %1479 = vperm.xlu0 %1478, %v1441
      %v1480 = vpop.permute.xlu0 %1479
      %1483 = vset.pattern.permute.xlu0 0
      %1484 = vperm.xlu0 %1483, %v1442
      %v1485 = vpop.permute.xlu0 %1484
      %1488 = vset.pattern.permute.xlu0 0
      %1489 = vperm.xlu0 %1488, %v1443
      %v1490 = vpop.permute.xlu0 %1489
      %1493 = vset.pattern.permute.xlu0 0
      %1494 = vperm.xlu0 %1493, %v1444
      %v1495 = vpop.permute.xlu0 %1494
      %1498 = vset.pattern.permute.xlu0 0
      %1499 = vperm.xlu0 %1498, %v1445
      %v1500 = vpop.permute.xlu0 %1499
      %1503 = vset.pattern.permute.xlu0 0
      %1504 = vperm.xlu0 %1503, %v1446
      %v1505 = vpop.permute.xlu0 %1504
      %v1507 = vmul.f32 %v1410, %v1450
      %v1508 = vmul.f32 %v1411, %v1450
      %v1509 = vmul.f32 %v1412, %v1455
      %v1510 = vmul.f32 %v1413, %v1455
      %v1511 = vmul.f32 %v1414, %v1460
      %v1512 = vmul.f32 %v1415, %v1460
      %v1513 = vmul.f32 %v1416, %v1465
      %v1514 = vmul.f32 %v1417, %v1465
      %v1515 = vmul.f32 %v1418, %v1470
      %v1516 = vmul.f32 %v1419, %v1470
      %v1517 = vmul.f32 %v1420, %v1475
      %v1518 = vmul.f32 %v1421, %v1475
      %v1519 = vmul.f32 %v1422, %v1480
      %v1520 = vmul.f32 %v1423, %v1480
      %v1521 = vmul.f32 %v1424, %v1485
      %v1522 = vmul.f32 %v1425, %v1485
      %v1523 = vmul.f32 %v1426, %v1490
      %v1524 = vmul.f32 %v1427, %v1490
      %v1525 = vmul.f32 %v1428, %v1495
      %v1526 = vmul.f32 %v1429, %v1495
      %v1527 = vmul.f32 %v1430, %v1500
      %v1528 = vmul.f32 %v1431, %v1500
      %v1529 = vmul.f32 %v1432, %v1505
      %v1530 = vmul.f32 %v1433, %v1505
      %v1531 = vadd.f32 %v1373, %v1507
      %v1532 = vadd.f32 %v1374, %v1508
      %v1533 = vadd.f32 %v1375, %v1509
      %v1534 = vadd.f32 %v1376, %v1510
      %v1535 = vadd.f32 %v1377, %v1511
      %v1536 = vadd.f32 %v1378, %v1512
      %v1537 = vadd.f32 %v1379, %v1513
      %v1538 = vadd.f32 %v1380, %v1514
      %v1539 = vadd.f32 %v1381, %v1515
      %v1540 = vadd.f32 %v1382, %v1516
      %v1541 = vadd.f32 %v1383, %v1517
      %v1542 = vadd.f32 %v1384, %v1518
      %v1543 = vadd.f32 %v1385, %v1519
      %v1544 = vadd.f32 %v1386, %v1520
      %v1545 = vadd.f32 %v1387, %v1521
      %v1546 = vadd.f32 %v1388, %v1522
      %v1547 = vadd.f32 %v1389, %v1523
      %v1548 = vadd.f32 %v1390, %v1524
      %v1549 = vadd.f32 %v1391, %v1525
      %v1550 = vadd.f32 %v1392, %v1526
      %v1551 = vadd.f32 %v1393, %v1527
      %v1552 = vadd.f32 %v1394, %v1528
      %v1553 = vadd.f32 %v1395, %v1529
      %v1554 = vadd.f32 %v1396, %v1530
      %1555 = vrot.lane.b32.xlu0 %v403, 127
      %v1556 = vpop.permute.xlu0 %1555
      %1557 = vrot.lane.b32.xlu0 %v409, 127
      %v1558 = vpop.permute.xlu0 %1557
      %1559 = vrot.lane.b32.xlu0 %v415, 127
      %v1560 = vpop.permute.xlu0 %1559
      %1561 = vrot.lane.b32.xlu0 %v421, 127
      %v1562 = vpop.permute.xlu0 %1561
      %1563 = vrot.lane.b32.xlu0 %v427, 127
      %v1564 = vpop.permute.xlu0 %1563
      %1565 = vrot.lane.b32.xlu0 %v433, 127
      %v1566 = vpop.permute.xlu0 %1565
      %1567 = vrot.lane.b32.xlu0 %v439, 127
      %v1568 = vpop.permute.xlu0 %1567
      %1569 = vrot.lane.b32.xlu0 %v445, 127
      %v1570 = vpop.permute.xlu0 %1569
      %1571 = vrot.lane.b32.xlu0 %v451, 127
      %v1572 = vpop.permute.xlu0 %1571
      %1573 = vrot.lane.b32.xlu0 %v457, 127
      %v1574 = vpop.permute.xlu0 %1573
      %1575 = vrot.lane.b32.xlu0 %v463, 127
      %v1576 = vpop.permute.xlu0 %1575
      %1577 = vrot.lane.b32.xlu0 %v469, 127
      %v1578 = vpop.permute.xlu0 %1577
      %1579 = vrot.lane.b32.xlu0 %v405, 127
      %v1580 = vpop.permute.xlu0 %1579
      %1581 = vrot.lane.b32.xlu0 %v411, 127
      %v1582 = vpop.permute.xlu0 %1581
      %1583 = vrot.lane.b32.xlu0 %v417, 127
      %v1584 = vpop.permute.xlu0 %1583
      %1585 = vrot.lane.b32.xlu0 %v423, 127
      %v1586 = vpop.permute.xlu0 %1585
      %1587 = vrot.lane.b32.xlu0 %v429, 127
      %v1588 = vpop.permute.xlu0 %1587
      %1589 = vrot.lane.b32.xlu0 %v435, 127
      %v1590 = vpop.permute.xlu0 %1589
      %1591 = vrot.lane.b32.xlu0 %v441, 127
      %v1592 = vpop.permute.xlu0 %1591
      %1593 = vrot.lane.b32.xlu0 %v447, 127
      %v1594 = vpop.permute.xlu0 %1593
      %1595 = vrot.lane.b32.xlu0 %v453, 127
      %v1596 = vpop.permute.xlu0 %1595
      %1597 = vrot.lane.b32.xlu0 %v459, 127
      %v1598 = vpop.permute.xlu0 %1597
      %1599 = vrot.lane.b32.xlu0 %v465, 127
      %v1600 = vpop.permute.xlu0 %1599
      %1601 = vrot.lane.b32.xlu0 %v471, 127
      %v1602 = vpop.permute.xlu0 %1601
      %vm1603 = vcmp.lt.s32.totalorder %v522, 127
      %v1604 = vsel %vm1603, %v1556, %v1580
      %v1605 = vsel %vm1603, %v1558, %v1582
      %v1606 = vsel %vm1603, %v1560, %v1584
      %v1607 = vsel %vm1603, %v1562, %v1586
      %v1608 = vsel %vm1603, %v1564, %v1588
      %v1609 = vsel %vm1603, %v1566, %v1590
      %v1610 = vsel %vm1603, %v1568, %v1592
      %v1611 = vsel %vm1603, %v1570, %v1594
      %v1612 = vsel %vm1603, %v1572, %v1596
      %v1613 = vsel %vm1603, %v1574, %v1598
      %v1614 = vsel %vm1603, %v1576, %v1600
      %v1615 = vsel %vm1603, %v1578, %v1602
      %v1616 = vsel %vm1603, %v1580, %v1556
      %v1617 = vsel %vm1603, %v1582, %v1558
      %v1618 = vsel %vm1603, %v1584, %v1560
      %v1619 = vsel %vm1603, %v1586, %v1562
      %v1620 = vsel %vm1603, %v1588, %v1564
      %v1621 = vsel %vm1603, %v1590, %v1566
      %v1622 = vsel %vm1603, %v1592, %v1568
      %v1623 = vsel %vm1603, %v1594, %v1570
      %v1624 = vsel %vm1603, %v1596, %v1572
      %v1625 = vsel %vm1603, %v1598, %v1574
      %v1626 = vsel %vm1603, %v1600, %v1576
      %v1627 = vsel %vm1603, %v1602, %v1578
      %s1628 = scalar_lea.vmem %s3, 10
      %v1629 = vld [vmem:[%s1628] sm:$0x3]
      %v1631 = vlaneseq
      %v1632 = vshrl.u32 %v1631, 7
      %v1633 = vsub.s32 0, %v1632
      %v1634 = vrot.slane %v1629, %v1633
      %v1635 = vlaneseq
      %v1636 = vshrl.u32 %v1635, 7
      %v1637 = vsub.s32 1, %v1636
      %v1638 = vrot.slane %v1629, %v1637
      %v1641 = vmul.f32 %v1604, %v1634
      %v1642 = vmul.f32 %v1616, %v1638
      %v1643 = vmul.f32 %v1605, %v1634
      %v1644 = vmul.f32 %v1617, %v1638
      %v1645 = vmul.f32 %v1606, %v1634
      %v1646 = vmul.f32 %v1618, %v1638
      %v1647 = vmul.f32 %v1607, %v1634
      %v1648 = vmul.f32 %v1619, %v1638
      %v1649 = vmul.f32 %v1608, %v1634
      %v1650 = vmul.f32 %v1620, %v1638
      %v1651 = vmul.f32 %v1609, %v1634
      %v1652 = vmul.f32 %v1621, %v1638
      %v1653 = vmul.f32 %v1610, %v1634
      %v1654 = vmul.f32 %v1622, %v1638
      %v1655 = vmul.f32 %v1611, %v1634
      %v1656 = vmul.f32 %v1623, %v1638
      %v1657 = vmul.f32 %v1612, %v1634
      %v1658 = vmul.f32 %v1624, %v1638
      %v1659 = vmul.f32 %v1613, %v1634
      %v1660 = vmul.f32 %v1625, %v1638
      %v1661 = vmul.f32 %v1614, %v1634
      %v1662 = vmul.f32 %v1626, %v1638
      %v1663 = vmul.f32 %v1615, %v1634
      %v1664 = vmul.f32 %v1627, %v1638
      %s1665 = scalar_lea.vmem %s2, 480
      %v1666 = vld [vmem:[%s1665] sm:$0xff]
      %v1667 = vld [vmem:[%s1665 + $0x8] sm:$0xff]
      %v1668 = vld [vmem:[%s1665 + $0x10] sm:$0xff]
      %v1669 = vld [vmem:[%s1665 + $0x18] sm:$0xff]
      %v1670 = vld [vmem:[%s1665 + $0x20] sm:$0xff]
      %v1671 = vld [vmem:[%s1665 + $0x28] sm:$0xff]
      %v1672 = vld [vmem:[%s1665 + $0x30] sm:$0xff]
      %v1673 = vld [vmem:[%s1665 + $0x38] sm:$0xff]
      %v1674 = vld [vmem:[%s1665 + $0x40] sm:$0xff]
      %v1675 = vld [vmem:[%s1665 + $0x48] sm:$0xff]
      %v1676 = vld [vmem:[%s1665 + $0x50] sm:$0xff]
      %v1677 = vld [vmem:[%s1665 + $0x58] sm:$0xff]
      %1679 = vset.pattern.permute.xlu0 0
      %1680 = vperm.xlu0 %1679, %v1666
      %v1681 = vpop.permute.xlu0 %1680
      %1684 = vset.pattern.permute.xlu0 0
      %1685 = vperm.xlu0 %1684, %v1667
      %v1686 = vpop.permute.xlu0 %1685
      %1689 = vset.pattern.permute.xlu0 0
      %1690 = vperm.xlu0 %1689, %v1668
      %v1691 = vpop.permute.xlu0 %1690
      %1694 = vset.pattern.permute.xlu0 0
      %1695 = vperm.xlu0 %1694, %v1669
      %v1696 = vpop.permute.xlu0 %1695
      %1699 = vset.pattern.permute.xlu0 0
      %1700 = vperm.xlu0 %1699, %v1670
      %v1701 = vpop.permute.xlu0 %1700
      %1704 = vset.pattern.permute.xlu0 0
      %1705 = vperm.xlu0 %1704, %v1671
      %v1706 = vpop.permute.xlu0 %1705
      %1709 = vset.pattern.permute.xlu0 0
      %1710 = vperm.xlu0 %1709, %v1672
      %v1711 = vpop.permute.xlu0 %1710
      %1714 = vset.pattern.permute.xlu0 0
      %1715 = vperm.xlu0 %1714, %v1673
      %v1716 = vpop.permute.xlu0 %1715
      %1719 = vset.pattern.permute.xlu0 0
      %1720 = vperm.xlu0 %1719, %v1674
      %v1721 = vpop.permute.xlu0 %1720
      %1724 = vset.pattern.permute.xlu0 0
      %1725 = vperm.xlu0 %1724, %v1675
      %v1726 = vpop.permute.xlu0 %1725
      %1729 = vset.pattern.permute.xlu0 0
      %1730 = vperm.xlu0 %1729, %v1676
      %v1731 = vpop.permute.xlu0 %1730
      %1734 = vset.pattern.permute.xlu0 0
      %1735 = vperm.xlu0 %1734, %v1677
      %v1736 = vpop.permute.xlu0 %1735
      %v1738 = vmul.f32 %v1641, %v1681
      %v1739 = vmul.f32 %v1642, %v1681
      %v1740 = vmul.f32 %v1643, %v1686
      %v1741 = vmul.f32 %v1644, %v1686
      %v1742 = vmul.f32 %v1645, %v1691
      %v1743 = vmul.f32 %v1646, %v1691
      %v1744 = vmul.f32 %v1647, %v1696
      %v1745 = vmul.f32 %v1648, %v1696
      %v1746 = vmul.f32 %v1649, %v1701
      %v1747 = vmul.f32 %v1650, %v1701
      %v1748 = vmul.f32 %v1651, %v1706
      %v1749 = vmul.f32 %v1652, %v1706
      %v1750 = vmul.f32 %v1653, %v1711
      %v1751 = vmul.f32 %v1654, %v1711
      %v1752 = vmul.f32 %v1655, %v1716
      %v1753 = vmul.f32 %v1656, %v1716
      %v1754 = vmul.f32 %v1657, %v1721
      %v1755 = vmul.f32 %v1658, %v1721
      %v1756 = vmul.f32 %v1659, %v1726
      %v1757 = vmul.f32 %v1660, %v1726
      %v1758 = vmul.f32 %v1661, %v1731
      %v1759 = vmul.f32 %v1662, %v1731
      %v1760 = vmul.f32 %v1663, %v1736
      %v1761 = vmul.f32 %v1664, %v1736
      %v1762 = vadd.f32 %v1531, %v1738
      %v1763 = vadd.f32 %v1532, %v1739
      %v1764 = vadd.f32 %v1533, %v1740
      %v1765 = vadd.f32 %v1534, %v1741
      %v1766 = vadd.f32 %v1535, %v1742
      %v1767 = vadd.f32 %v1536, %v1743
      %v1768 = vadd.f32 %v1537, %v1744
      %v1769 = vadd.f32 %v1538, %v1745
      %v1770 = vadd.f32 %v1539, %v1746
      %v1771 = vadd.f32 %v1540, %v1747
      %v1772 = vadd.f32 %v1541, %v1748
      %v1773 = vadd.f32 %v1542, %v1749
      %v1774 = vadd.f32 %v1543, %v1750
      %v1775 = vadd.f32 %v1544, %v1751
      %v1776 = vadd.f32 %v1545, %v1752
      %v1777 = vadd.f32 %v1546, %v1753
      %v1778 = vadd.f32 %v1547, %v1754
      %v1779 = vadd.f32 %v1548, %v1755
      %v1780 = vadd.f32 %v1549, %v1756
      %v1781 = vadd.f32 %v1550, %v1757
      %v1782 = vadd.f32 %v1551, %v1758
      %v1783 = vadd.f32 %v1552, %v1759
      %v1784 = vadd.f32 %v1553, %v1760
      %v1785 = vadd.f32 %v1554, %v1761
      %1786 = vrot.lane.b32.xlu0 %v403, 113
      %v1787 = vpop.permute.xlu0 %1786
      %1788 = vrot.lane.b32.xlu0 %v409, 113
      %v1789 = vpop.permute.xlu0 %1788
      %1790 = vrot.lane.b32.xlu0 %v415, 113
      %v1791 = vpop.permute.xlu0 %1790
      %1792 = vrot.lane.b32.xlu0 %v421, 113
      %v1793 = vpop.permute.xlu0 %1792
      %1794 = vrot.lane.b32.xlu0 %v427, 113
      %v1795 = vpop.permute.xlu0 %1794
      %1796 = vrot.lane.b32.xlu0 %v433, 113
      %v1797 = vpop.permute.xlu0 %1796
      %1798 = vrot.lane.b32.xlu0 %v439, 113
      %v1799 = vpop.permute.xlu0 %1798
      %1800 = vrot.lane.b32.xlu0 %v445, 113
      %v1801 = vpop.permute.xlu0 %1800
      %1802 = vrot.lane.b32.xlu0 %v451, 113
      %v1803 = vpop.permute.xlu0 %1802
      %1804 = vrot.lane.b32.xlu0 %v457, 113
      %v1805 = vpop.permute.xlu0 %1804
      %1806 = vrot.lane.b32.xlu0 %v463, 113
      %v1807 = vpop.permute.xlu0 %1806
      %1808 = vrot.lane.b32.xlu0 %v469, 113
      %v1809 = vpop.permute.xlu0 %1808
      %1810 = vrot.lane.b32.xlu0 %v405, 113
      %v1811 = vpop.permute.xlu0 %1810
      %1812 = vrot.lane.b32.xlu0 %v411, 113
      %v1813 = vpop.permute.xlu0 %1812
      %1814 = vrot.lane.b32.xlu0 %v417, 113
      %v1815 = vpop.permute.xlu0 %1814
      %1816 = vrot.lane.b32.xlu0 %v423, 113
      %v1817 = vpop.permute.xlu0 %1816
      %1818 = vrot.lane.b32.xlu0 %v429, 113
      %v1819 = vpop.permute.xlu0 %1818
      %1820 = vrot.lane.b32.xlu0 %v435, 113
      %v1821 = vpop.permute.xlu0 %1820
      %1822 = vrot.lane.b32.xlu0 %v441, 113
      %v1823 = vpop.permute.xlu0 %1822
      %1824 = vrot.lane.b32.xlu0 %v447, 113
      %v1825 = vpop.permute.xlu0 %1824
      %1826 = vrot.lane.b32.xlu0 %v453, 113
      %v1827 = vpop.permute.xlu0 %1826
      %1828 = vrot.lane.b32.xlu0 %v459, 113
      %v1829 = vpop.permute.xlu0 %1828
      %1830 = vrot.lane.b32.xlu0 %v465, 113
      %v1831 = vpop.permute.xlu0 %1830
      %1832 = vrot.lane.b32.xlu0 %v471, 113
      %v1833 = vpop.permute.xlu0 %1832
      %vm1834 = vcmp.lt.s32.totalorder %v522, 113
      %v1835 = vsel %vm1834, %v1787, %v1811
      %v1836 = vsel %vm1834, %v1789, %v1813
      %v1837 = vsel %vm1834, %v1791, %v1815
      %v1838 = vsel %vm1834, %v1793, %v1817
      %v1839 = vsel %vm1834, %v1795, %v1819
      %v1840 = vsel %vm1834, %v1797, %v1821
      %v1841 = vsel %vm1834, %v1799, %v1823
      %v1842 = vsel %vm1834, %v1801, %v1825
      %v1843 = vsel %vm1834, %v1803, %v1827
      %v1844 = vsel %vm1834, %v1805, %v1829
      %v1845 = vsel %vm1834, %v1807, %v1831
      %v1846 = vsel %vm1834, %v1809, %v1833
      %v1847 = vsel %vm1834, %v1811, %v1787
      %v1848 = vsel %vm1834, %v1813, %v1789
      %v1849 = vsel %vm1834, %v1815, %v1791
      %v1850 = vsel %vm1834, %v1817, %v1793
      %v1851 = vsel %vm1834, %v1819, %v1795
      %v1852 = vsel %vm1834, %v1821, %v1797
      %v1853 = vsel %vm1834, %v1823, %v1799
      %v1854 = vsel %vm1834, %v1825, %v1801
      %v1855 = vsel %vm1834, %v1827, %v1803
      %v1856 = vsel %vm1834, %v1829, %v1805
      %v1857 = vsel %vm1834, %v1831, %v1807
      %v1858 = vsel %vm1834, %v1833, %v1809
      %s1859 = scalar_lea.vmem %s3, 12
      %v1860 = vld [vmem:[%s1859] sm:$0x3]
      %v1862 = vlaneseq
      %v1863 = vshrl.u32 %v1862, 7
      %v1864 = vsub.s32 0, %v1863
      %v1865 = vrot.slane %v1860, %v1864
      %v1866 = vlaneseq
      %v1867 = vshrl.u32 %v1866, 7
      %v1868 = vsub.s32 1, %v1867
      %v1869 = vrot.slane %v1860, %v1868
      %v1872 = vmul.f32 %v1835, %v1865
      %v1873 = vmul.f32 %v1847, %v1869
      %v1874 = vmul.f32 %v1836, %v1865
      %v1875 = vmul.f32 %v1848, %v1869
      %v1876 = vmul.f32 %v1837, %v1865
      %v1877 = vmul.f32 %v1849, %v1869
      %v1878 = vmul.f32 %v1838, %v1865
      %v1879 = vmul.f32 %v1850, %v1869
      %v1880 = vmul.f32 %v1839, %v1865
      %v1881 = vmul.f32 %v1851, %v1869
      %v1882 = vmul.f32 %v1840, %v1865
      %v1883 = vmul.f32 %v1852, %v1869
      %v1884 = vmul.f32 %v1841, %v1865
      %v1885 = vmul.f32 %v1853, %v1869
      %v1886 = vmul.f32 %v1842, %v1865
      %v1887 = vmul.f32 %v1854, %v1869
      %v1888 = vmul.f32 %v1843, %v1865
      %v1889 = vmul.f32 %v1855, %v1869
      %v1890 = vmul.f32 %v1844, %v1865
      %v1891 = vmul.f32 %v1856, %v1869
      %v1892 = vmul.f32 %v1845, %v1865
      %v1893 = vmul.f32 %v1857, %v1869
      %v1894 = vmul.f32 %v1846, %v1865
      %v1895 = vmul.f32 %v1858, %v1869
      %s1896 = scalar_lea.vmem %s2, 576
      %v1897 = vld [vmem:[%s1896] sm:$0xff]
      %v1898 = vld [vmem:[%s1896 + $0x8] sm:$0xff]
      %v1899 = vld [vmem:[%s1896 + $0x10] sm:$0xff]
      %v1900 = vld [vmem:[%s1896 + $0x18] sm:$0xff]
      %v1901 = vld [vmem:[%s1896 + $0x20] sm:$0xff]
      %v1902 = vld [vmem:[%s1896 + $0x28] sm:$0xff]
      %v1903 = vld [vmem:[%s1896 + $0x30] sm:$0xff]
      %v1904 = vld [vmem:[%s1896 + $0x38] sm:$0xff]
      %v1905 = vld [vmem:[%s1896 + $0x40] sm:$0xff]
      %v1906 = vld [vmem:[%s1896 + $0x48] sm:$0xff]
      %v1907 = vld [vmem:[%s1896 + $0x50] sm:$0xff]
      %v1908 = vld [vmem:[%s1896 + $0x58] sm:$0xff]
      %1910 = vset.pattern.permute.xlu0 0
      %1911 = vperm.xlu0 %1910, %v1897
      %v1912 = vpop.permute.xlu0 %1911
      %1915 = vset.pattern.permute.xlu0 0
      %1916 = vperm.xlu0 %1915, %v1898
      %v1917 = vpop.permute.xlu0 %1916
      %1920 = vset.pattern.permute.xlu0 0
      %1921 = vperm.xlu0 %1920, %v1899
      %v1922 = vpop.permute.xlu0 %1921
      %1925 = vset.pattern.permute.xlu0 0
      %1926 = vperm.xlu0 %1925, %v1900
      %v1927 = vpop.permute.xlu0 %1926
      %1930 = vset.pattern.permute.xlu0 0
      %1931 = vperm.xlu0 %1930, %v1901
      %v1932 = vpop.permute.xlu0 %1931
      %1935 = vset.pattern.permute.xlu0 0
      %1936 = vperm.xlu0 %1935, %v1902
      %v1937 = vpop.permute.xlu0 %1936
      %1940 = vset.pattern.permute.xlu0 0
      %1941 = vperm.xlu0 %1940, %v1903
      %v1942 = vpop.permute.xlu0 %1941
      %1945 = vset.pattern.permute.xlu0 0
      %1946 = vperm.xlu0 %1945, %v1904
      %v1947 = vpop.permute.xlu0 %1946
      %1950 = vset.pattern.permute.xlu0 0
      %1951 = vperm.xlu0 %1950, %v1905
      %v1952 = vpop.permute.xlu0 %1951
      %1955 = vset.pattern.permute.xlu0 0
      %1956 = vperm.xlu0 %1955, %v1906
      %v1957 = vpop.permute.xlu0 %1956
      %1960 = vset.pattern.permute.xlu0 0
      %1961 = vperm.xlu0 %1960, %v1907
      %v1962 = vpop.permute.xlu0 %1961
      %1965 = vset.pattern.permute.xlu0 0
      %1966 = vperm.xlu0 %1965, %v1908
      %v1967 = vpop.permute.xlu0 %1966
      %v1969 = vmul.f32 %v1872, %v1912
      %v1970 = vmul.f32 %v1873, %v1912
      %v1971 = vmul.f32 %v1874, %v1917
      %v1972 = vmul.f32 %v1875, %v1917
      %v1973 = vmul.f32 %v1876, %v1922
      %v1974 = vmul.f32 %v1877, %v1922
      %v1975 = vmul.f32 %v1878, %v1927
      %v1976 = vmul.f32 %v1879, %v1927
      %v1977 = vmul.f32 %v1880, %v1932
      %v1978 = vmul.f32 %v1881, %v1932
      %v1979 = vmul.f32 %v1882, %v1937
      %v1980 = vmul.f32 %v1883, %v1937
      %v1981 = vmul.f32 %v1884, %v1942
      %v1982 = vmul.f32 %v1885, %v1942
      %v1983 = vmul.f32 %v1886, %v1947
      %v1984 = vmul.f32 %v1887, %v1947
      %v1985 = vmul.f32 %v1888, %v1952
      %v1986 = vmul.f32 %v1889, %v1952
      %v1987 = vmul.f32 %v1890, %v1957
      %v1988 = vmul.f32 %v1891, %v1957
      %v1989 = vmul.f32 %v1892, %v1962
      %v1990 = vmul.f32 %v1893, %v1962
      %v1991 = vmul.f32 %v1894, %v1967
      %v1992 = vmul.f32 %v1895, %v1967
      %v1993 = vadd.f32 %v1762, %v1969
      %v1994 = vadd.f32 %v1763, %v1970
      %v1995 = vadd.f32 %v1764, %v1971
      %v1996 = vadd.f32 %v1765, %v1972
      %v1997 = vadd.f32 %v1766, %v1973
      %v1998 = vadd.f32 %v1767, %v1974
      %v1999 = vadd.f32 %v1768, %v1975
      %v2000 = vadd.f32 %v1769, %v1976
      %v2001 = vadd.f32 %v1770, %v1977
      %v2002 = vadd.f32 %v1771, %v1978
      %v2003 = vadd.f32 %v1772, %v1979
      %v2004 = vadd.f32 %v1773, %v1980
      %v2005 = vadd.f32 %v1774, %v1981
      %v2006 = vadd.f32 %v1775, %v1982
      %v2007 = vadd.f32 %v1776, %v1983
      %v2008 = vadd.f32 %v1777, %v1984
      %v2009 = vadd.f32 %v1778, %v1985
      %v2010 = vadd.f32 %v1779, %v1986
      %v2011 = vadd.f32 %v1780, %v1987
      %v2012 = vadd.f32 %v1781, %v1988
      %v2013 = vadd.f32 %v1782, %v1989
      %v2014 = vadd.f32 %v1783, %v1990
      %v2015 = vadd.f32 %v1784, %v1991
      %v2016 = vadd.f32 %v1785, %v1992
      %2017 = vrot.lane.b32.xlu0 %v403, 112
      %v2018 = vpop.permute.xlu0 %2017
      %2019 = vrot.lane.b32.xlu0 %v409, 112
      %v2020 = vpop.permute.xlu0 %2019
      %2021 = vrot.lane.b32.xlu0 %v415, 112
      %v2022 = vpop.permute.xlu0 %2021
      %2023 = vrot.lane.b32.xlu0 %v421, 112
      %v2024 = vpop.permute.xlu0 %2023
      %2025 = vrot.lane.b32.xlu0 %v427, 112
      %v2026 = vpop.permute.xlu0 %2025
      %2027 = vrot.lane.b32.xlu0 %v433, 112
      %v2028 = vpop.permute.xlu0 %2027
      %2029 = vrot.lane.b32.xlu0 %v439, 112
      %v2030 = vpop.permute.xlu0 %2029
      %2031 = vrot.lane.b32.xlu0 %v445, 112
      %v2032 = vpop.permute.xlu0 %2031
      %2033 = vrot.lane.b32.xlu0 %v451, 112
      %v2034 = vpop.permute.xlu0 %2033
      %2035 = vrot.lane.b32.xlu0 %v457, 112
      %v2036 = vpop.permute.xlu0 %2035
      %2037 = vrot.lane.b32.xlu0 %v463, 112
      %v2038 = vpop.permute.xlu0 %2037
      %2039 = vrot.lane.b32.xlu0 %v469, 112
      %v2040 = vpop.permute.xlu0 %2039
      %2041 = vrot.lane.b32.xlu0 %v405, 112
      %v2042 = vpop.permute.xlu0 %2041
      %2043 = vrot.lane.b32.xlu0 %v411, 112
      %v2044 = vpop.permute.xlu0 %2043
      %2045 = vrot.lane.b32.xlu0 %v417, 112
      %v2046 = vpop.permute.xlu0 %2045
      %2047 = vrot.lane.b32.xlu0 %v423, 112
      %v2048 = vpop.permute.xlu0 %2047
      %2049 = vrot.lane.b32.xlu0 %v429, 112
      %v2050 = vpop.permute.xlu0 %2049
      %2051 = vrot.lane.b32.xlu0 %v435, 112
      %v2052 = vpop.permute.xlu0 %2051
      %2053 = vrot.lane.b32.xlu0 %v441, 112
      %v2054 = vpop.permute.xlu0 %2053
      %2055 = vrot.lane.b32.xlu0 %v447, 112
      %v2056 = vpop.permute.xlu0 %2055
      %2057 = vrot.lane.b32.xlu0 %v453, 112
      %v2058 = vpop.permute.xlu0 %2057
      %2059 = vrot.lane.b32.xlu0 %v459, 112
      %v2060 = vpop.permute.xlu0 %2059
      %2061 = vrot.lane.b32.xlu0 %v465, 112
      %v2062 = vpop.permute.xlu0 %2061
      %2063 = vrot.lane.b32.xlu0 %v471, 112
      %v2064 = vpop.permute.xlu0 %2063
      %vm2065 = vcmp.lt.s32.totalorder %v522, 112
      %v2066 = vsel %vm2065, %v2018, %v2042
      %v2067 = vsel %vm2065, %v2020, %v2044
      %v2068 = vsel %vm2065, %v2022, %v2046
      %v2069 = vsel %vm2065, %v2024, %v2048
      %v2070 = vsel %vm2065, %v2026, %v2050
      %v2071 = vsel %vm2065, %v2028, %v2052
      %v2072 = vsel %vm2065, %v2030, %v2054
      %v2073 = vsel %vm2065, %v2032, %v2056
      %v2074 = vsel %vm2065, %v2034, %v2058
      %v2075 = vsel %vm2065, %v2036, %v2060
      %v2076 = vsel %vm2065, %v2038, %v2062
      %v2077 = vsel %vm2065, %v2040, %v2064
      %v2078 = vsel %vm2065, %v2042, %v2018
      %v2079 = vsel %vm2065, %v2044, %v2020
      %v2080 = vsel %vm2065, %v2046, %v2022
      %v2081 = vsel %vm2065, %v2048, %v2024
      %v2082 = vsel %vm2065, %v2050, %v2026
      %v2083 = vsel %vm2065, %v2052, %v2028
      %v2084 = vsel %vm2065, %v2054, %v2030
      %v2085 = vsel %vm2065, %v2056, %v2032
      %v2086 = vsel %vm2065, %v2058, %v2034
      %v2087 = vsel %vm2065, %v2060, %v2036
      %v2088 = vsel %vm2065, %v2062, %v2038
      %v2089 = vsel %vm2065, %v2064, %v2040
      %s2090 = scalar_lea.vmem %s3, 14
      %v2091 = vld [vmem:[%s2090] sm:$0x3]
      %v2093 = vlaneseq
      %v2094 = vshrl.u32 %v2093, 7
      %v2095 = vsub.s32 0, %v2094
      %v2096 = vrot.slane %v2091, %v2095
      %v2097 = vlaneseq
      %v2098 = vshrl.u32 %v2097, 7
      %v2099 = vsub.s32 1, %v2098
      %v2100 = vrot.slane %v2091, %v2099
      %v2103 = vmul.f32 %v2066, %v2096
      %v2104 = vmul.f32 %v2078, %v2100
      %v2105 = vmul.f32 %v2067, %v2096
      %v2106 = vmul.f32 %v2079, %v2100
      %v2107 = vmul.f32 %v2068, %v2096
      %v2108 = vmul.f32 %v2080, %v2100
      %v2109 = vmul.f32 %v2069, %v2096
      %v2110 = vmul.f32 %v2081, %v2100
      %v2111 = vmul.f32 %v2070, %v2096
      %v2112 = vmul.f32 %v2082, %v2100
      %v2113 = vmul.f32 %v2071, %v2096
      %v2114 = vmul.f32 %v2083, %v2100
      %v2115 = vmul.f32 %v2072, %v2096
      %v2116 = vmul.f32 %v2084, %v2100
      %v2117 = vmul.f32 %v2073, %v2096
      %v2118 = vmul.f32 %v2085, %v2100
      %v2119 = vmul.f32 %v2074, %v2096
      %v2120 = vmul.f32 %v2086, %v2100
      %v2121 = vmul.f32 %v2075, %v2096
      %v2122 = vmul.f32 %v2087, %v2100
      %v2123 = vmul.f32 %v2076, %v2096
      %v2124 = vmul.f32 %v2088, %v2100
      %v2125 = vmul.f32 %v2077, %v2096
      %v2126 = vmul.f32 %v2089, %v2100
      %s2127 = scalar_lea.vmem %s2, 672
      %v2128 = vld [vmem:[%s2127] sm:$0xff]
      %v2129 = vld [vmem:[%s2127 + $0x8] sm:$0xff]
      %v2130 = vld [vmem:[%s2127 + $0x10] sm:$0xff]
      %v2131 = vld [vmem:[%s2127 + $0x18] sm:$0xff]
      %v2132 = vld [vmem:[%s2127 + $0x20] sm:$0xff]
      %v2133 = vld [vmem:[%s2127 + $0x28] sm:$0xff]
      %v2134 = vld [vmem:[%s2127 + $0x30] sm:$0xff]
      %v2135 = vld [vmem:[%s2127 + $0x38] sm:$0xff]
      %v2136 = vld [vmem:[%s2127 + $0x40] sm:$0xff]
      %v2137 = vld [vmem:[%s2127 + $0x48] sm:$0xff]
      %v2138 = vld [vmem:[%s2127 + $0x50] sm:$0xff]
      %v2139 = vld [vmem:[%s2127 + $0x58] sm:$0xff]
      %2141 = vset.pattern.permute.xlu0 0
      %2142 = vperm.xlu0 %2141, %v2128
      %v2143 = vpop.permute.xlu0 %2142
      %2146 = vset.pattern.permute.xlu0 0
      %2147 = vperm.xlu0 %2146, %v2129
      %v2148 = vpop.permute.xlu0 %2147
      %2151 = vset.pattern.permute.xlu0 0
      %2152 = vperm.xlu0 %2151, %v2130
      %v2153 = vpop.permute.xlu0 %2152
      %2156 = vset.pattern.permute.xlu0 0
      %2157 = vperm.xlu0 %2156, %v2131
      %v2158 = vpop.permute.xlu0 %2157
      %2161 = vset.pattern.permute.xlu0 0
      %2162 = vperm.xlu0 %2161, %v2132
      %v2163 = vpop.permute.xlu0 %2162
      %2166 = vset.pattern.permute.xlu0 0
      %2167 = vperm.xlu0 %2166, %v2133
      %v2168 = vpop.permute.xlu0 %2167
      %2171 = vset.pattern.permute.xlu0 0
      %2172 = vperm.xlu0 %2171, %v2134
      %v2173 = vpop.permute.xlu0 %2172
      %2176 = vset.pattern.permute.xlu0 0
      %2177 = vperm.xlu0 %2176, %v2135
      %v2178 = vpop.permute.xlu0 %2177
      %2181 = vset.pattern.permute.xlu0 0
      %2182 = vperm.xlu0 %2181, %v2136
      %v2183 = vpop.permute.xlu0 %2182
      %2186 = vset.pattern.permute.xlu0 0
      %2187 = vperm.xlu0 %2186, %v2137
      %v2188 = vpop.permute.xlu0 %2187
      %2191 = vset.pattern.permute.xlu0 0
      %2192 = vperm.xlu0 %2191, %v2138
      %v2193 = vpop.permute.xlu0 %2192
      %2196 = vset.pattern.permute.xlu0 0
      %2197 = vperm.xlu0 %2196, %v2139
      %v2198 = vpop.permute.xlu0 %2197
      %v2200 = vmul.f32 %v2103, %v2143
      %v2201 = vmul.f32 %v2104, %v2143
      %v2202 = vmul.f32 %v2105, %v2148
      %v2203 = vmul.f32 %v2106, %v2148
      %v2204 = vmul.f32 %v2107, %v2153
      %v2205 = vmul.f32 %v2108, %v2153
      %v2206 = vmul.f32 %v2109, %v2158
      %v2207 = vmul.f32 %v2110, %v2158
      %v2208 = vmul.f32 %v2111, %v2163
      %v2209 = vmul.f32 %v2112, %v2163
      %v2210 = vmul.f32 %v2113, %v2168
      %v2211 = vmul.f32 %v2114, %v2168
      %v2212 = vmul.f32 %v2115, %v2173
      %v2213 = vmul.f32 %v2116, %v2173
      %v2214 = vmul.f32 %v2117, %v2178
      %v2215 = vmul.f32 %v2118, %v2178
      %v2216 = vmul.f32 %v2119, %v2183
      %v2217 = vmul.f32 %v2120, %v2183
      %v2218 = vmul.f32 %v2121, %v2188
      %v2219 = vmul.f32 %v2122, %v2188
      %v2220 = vmul.f32 %v2123, %v2193
      %v2221 = vmul.f32 %v2124, %v2193
      %v2222 = vmul.f32 %v2125, %v2198
      %v2223 = vmul.f32 %v2126, %v2198
      %v2224 = vadd.f32 %v1993, %v2200
      %v2225 = vadd.f32 %v1994, %v2201
      %v2226 = vadd.f32 %v1995, %v2202
      %v2227 = vadd.f32 %v1996, %v2203
      %v2228 = vadd.f32 %v1997, %v2204
      %v2229 = vadd.f32 %v1998, %v2205
      %v2230 = vadd.f32 %v1999, %v2206
      %v2231 = vadd.f32 %v2000, %v2207
      %v2232 = vadd.f32 %v2001, %v2208
      %v2233 = vadd.f32 %v2002, %v2209
      %v2234 = vadd.f32 %v2003, %v2210
      %v2235 = vadd.f32 %v2004, %v2211
      %v2236 = vadd.f32 %v2005, %v2212
      %v2237 = vadd.f32 %v2006, %v2213
      %v2238 = vadd.f32 %v2007, %v2214
      %v2239 = vadd.f32 %v2008, %v2215
      %v2240 = vadd.f32 %v2009, %v2216
      %v2241 = vadd.f32 %v2010, %v2217
      %v2242 = vadd.f32 %v2011, %v2218
      %v2243 = vadd.f32 %v2012, %v2219
      %v2244 = vadd.f32 %v2013, %v2220
      %v2245 = vadd.f32 %v2014, %v2221
      %v2246 = vadd.f32 %v2015, %v2222
      %v2247 = vadd.f32 %v2016, %v2223
      %2248 = vrot.lane.b32.xlu0 %v403, 111
      %v2249 = vpop.permute.xlu0 %2248
      %2250 = vrot.lane.b32.xlu0 %v409, 111
      %v2251 = vpop.permute.xlu0 %2250
      %2252 = vrot.lane.b32.xlu0 %v415, 111
      %v2253 = vpop.permute.xlu0 %2252
      %2254 = vrot.lane.b32.xlu0 %v421, 111
      %v2255 = vpop.permute.xlu0 %2254
      %2256 = vrot.lane.b32.xlu0 %v427, 111
      %v2257 = vpop.permute.xlu0 %2256
      %2258 = vrot.lane.b32.xlu0 %v433, 111
      %v2259 = vpop.permute.xlu0 %2258
      %2260 = vrot.lane.b32.xlu0 %v439, 111
      %v2261 = vpop.permute.xlu0 %2260
      %2262 = vrot.lane.b32.xlu0 %v445, 111
      %v2263 = vpop.permute.xlu0 %2262
      %2264 = vrot.lane.b32.xlu0 %v451, 111
      %v2265 = vpop.permute.xlu0 %2264
      %2266 = vrot.lane.b32.xlu0 %v457, 111
      %v2267 = vpop.permute.xlu0 %2266
      %2268 = vrot.lane.b32.xlu0 %v463, 111
      %v2269 = vpop.permute.xlu0 %2268
      %2270 = vrot.lane.b32.xlu0 %v469, 111
      %v2271 = vpop.permute.xlu0 %2270
      %2272 = vrot.lane.b32.xlu0 %v405, 111
      %v2273 = vpop.permute.xlu0 %2272
      %2274 = vrot.lane.b32.xlu0 %v411, 111
      %v2275 = vpop.permute.xlu0 %2274
      %2276 = vrot.lane.b32.xlu0 %v417, 111
      %v2277 = vpop.permute.xlu0 %2276
      %2278 = vrot.lane.b32.xlu0 %v423, 111
      %v2279 = vpop.permute.xlu0 %2278
      %2280 = vrot.lane.b32.xlu0 %v429, 111
      %v2281 = vpop.permute.xlu0 %2280
      %2282 = vrot.lane.b32.xlu0 %v435, 111
      %v2283 = vpop.permute.xlu0 %2282
      %2284 = vrot.lane.b32.xlu0 %v441, 111
      %v2285 = vpop.permute.xlu0 %2284
      %2286 = vrot.lane.b32.xlu0 %v447, 111
      %v2287 = vpop.permute.xlu0 %2286
      %2288 = vrot.lane.b32.xlu0 %v453, 111
      %v2289 = vpop.permute.xlu0 %2288
      %2290 = vrot.lane.b32.xlu0 %v459, 111
      %v2291 = vpop.permute.xlu0 %2290
      %2292 = vrot.lane.b32.xlu0 %v465, 111
      %v2293 = vpop.permute.xlu0 %2292
      %2294 = vrot.lane.b32.xlu0 %v471, 111
      %v2295 = vpop.permute.xlu0 %2294
      %vm2296 = vcmp.lt.s32.totalorder %v522, 111
      %v2297 = vsel %vm2296, %v2249, %v2273
      %v2298 = vsel %vm2296, %v2251, %v2275
      %v2299 = vsel %vm2296, %v2253, %v2277
      %v2300 = vsel %vm2296, %v2255, %v2279
      %v2301 = vsel %vm2296, %v2257, %v2281
      %v2302 = vsel %vm2296, %v2259, %v2283
      %v2303 = vsel %vm2296, %v2261, %v2285
      %v2304 = vsel %vm2296, %v2263, %v2287
      %v2305 = vsel %vm2296, %v2265, %v2289
      %v2306 = vsel %vm2296, %v2267, %v2291
      %v2307 = vsel %vm2296, %v2269, %v2293
      %v2308 = vsel %vm2296, %v2271, %v2295
      %v2309 = vsel %vm2296, %v2273, %v2249
      %v2310 = vsel %vm2296, %v2275, %v2251
      %v2311 = vsel %vm2296, %v2277, %v2253
      %v2312 = vsel %vm2296, %v2279, %v2255
      %v2313 = vsel %vm2296, %v2281, %v2257
      %v2314 = vsel %vm2296, %v2283, %v2259
      %v2315 = vsel %vm2296, %v2285, %v2261
      %v2316 = vsel %vm2296, %v2287, %v2263
      %v2317 = vsel %vm2296, %v2289, %v2265
      %v2318 = vsel %vm2296, %v2291, %v2267
      %v2319 = vsel %vm2296, %v2293, %v2269
      %v2320 = vsel %vm2296, %v2295, %v2271
      %s2321 = scalar_lea.vmem %s3, 16
      %v2322 = vld [vmem:[%s2321] sm:$0x3]
      %v2324 = vlaneseq
      %v2325 = vshrl.u32 %v2324, 7
      %v2326 = vsub.s32 0, %v2325
      %v2327 = vrot.slane %v2322, %v2326
      %v2328 = vlaneseq
      %v2329 = vshrl.u32 %v2328, 7
      %v2330 = vsub.s32 1, %v2329
      %v2331 = vrot.slane %v2322, %v2330
      %v2334 = vmul.f32 %v2297, %v2327
      %v2335 = vmul.f32 %v2309, %v2331
      %v2336 = vmul.f32 %v2298, %v2327
      %v2337 = vmul.f32 %v2310, %v2331
      %v2338 = vmul.f32 %v2299, %v2327
      %v2339 = vmul.f32 %v2311, %v2331
      %v2340 = vmul.f32 %v2300, %v2327
      %v2341 = vmul.f32 %v2312, %v2331
      %v2342 = vmul.f32 %v2301, %v2327
      %v2343 = vmul.f32 %v2313, %v2331
      %v2344 = vmul.f32 %v2302, %v2327
      %v2345 = vmul.f32 %v2314, %v2331
      %v2346 = vmul.f32 %v2303, %v2327
      %v2347 = vmul.f32 %v2315, %v2331
      %v2348 = vmul.f32 %v2304, %v2327
      %v2349 = vmul.f32 %v2316, %v2331
      %v2350 = vmul.f32 %v2305, %v2327
      %v2351 = vmul.f32 %v2317, %v2331
      %v2352 = vmul.f32 %v2306, %v2327
      %v2353 = vmul.f32 %v2318, %v2331
      %v2354 = vmul.f32 %v2307, %v2327
      %v2355 = vmul.f32 %v2319, %v2331
      %v2356 = vmul.f32 %v2308, %v2327
      %v2357 = vmul.f32 %v2320, %v2331
      %s2358 = scalar_lea.vmem %s2, 768
      %v2359 = vld [vmem:[%s2358] sm:$0xff]
      %v2360 = vld [vmem:[%s2358 + $0x8] sm:$0xff]
      %v2361 = vld [vmem:[%s2358 + $0x10] sm:$0xff]
      %v2362 = vld [vmem:[%s2358 + $0x18] sm:$0xff]
      %v2363 = vld [vmem:[%s2358 + $0x20] sm:$0xff]
      %v2364 = vld [vmem:[%s2358 + $0x28] sm:$0xff]
      %v2365 = vld [vmem:[%s2358 + $0x30] sm:$0xff]
      %v2366 = vld [vmem:[%s2358 + $0x38] sm:$0xff]
      %v2367 = vld [vmem:[%s2358 + $0x40] sm:$0xff]
      %v2368 = vld [vmem:[%s2358 + $0x48] sm:$0xff]
      %v2369 = vld [vmem:[%s2358 + $0x50] sm:$0xff]
      %v2370 = vld [vmem:[%s2358 + $0x58] sm:$0xff]
      %2372 = vset.pattern.permute.xlu0 0
      %2373 = vperm.xlu0 %2372, %v2359
      %v2374 = vpop.permute.xlu0 %2373
      %2377 = vset.pattern.permute.xlu0 0
      %2378 = vperm.xlu0 %2377, %v2360
      %v2379 = vpop.permute.xlu0 %2378
      %2382 = vset.pattern.permute.xlu0 0
      %2383 = vperm.xlu0 %2382, %v2361
      %v2384 = vpop.permute.xlu0 %2383
      %2387 = vset.pattern.permute.xlu0 0
      %2388 = vperm.xlu0 %2387, %v2362
      %v2389 = vpop.permute.xlu0 %2388
      %2392 = vset.pattern.permute.xlu0 0
      %2393 = vperm.xlu0 %2392, %v2363
      %v2394 = vpop.permute.xlu0 %2393
      %2397 = vset.pattern.permute.xlu0 0
      %2398 = vperm.xlu0 %2397, %v2364
      %v2399 = vpop.permute.xlu0 %2398
      %2402 = vset.pattern.permute.xlu0 0
      %2403 = vperm.xlu0 %2402, %v2365
      %v2404 = vpop.permute.xlu0 %2403
      %2407 = vset.pattern.permute.xlu0 0
      %2408 = vperm.xlu0 %2407, %v2366
      %v2409 = vpop.permute.xlu0 %2408
      %2412 = vset.pattern.permute.xlu0 0
      %2413 = vperm.xlu0 %2412, %v2367
      %v2414 = vpop.permute.xlu0 %2413
      %2417 = vset.pattern.permute.xlu0 0
      %2418 = vperm.xlu0 %2417, %v2368
      %v2419 = vpop.permute.xlu0 %2418
      %2422 = vset.pattern.permute.xlu0 0
      %2423 = vperm.xlu0 %2422, %v2369
      %v2424 = vpop.permute.xlu0 %2423
      %2427 = vset.pattern.permute.xlu0 0
      %2428 = vperm.xlu0 %2427, %v2370
      %v2429 = vpop.permute.xlu0 %2428
      %v2431 = vmul.f32 %v2334, %v2374
      %v2432 = vmul.f32 %v2335, %v2374
      %v2433 = vmul.f32 %v2336, %v2379
      %v2434 = vmul.f32 %v2337, %v2379
      %v2435 = vmul.f32 %v2338, %v2384
      %v2436 = vmul.f32 %v2339, %v2384
      %v2437 = vmul.f32 %v2340, %v2389
      %v2438 = vmul.f32 %v2341, %v2389
      %v2439 = vmul.f32 %v2342, %v2394
      %v2440 = vmul.f32 %v2343, %v2394
      %v2441 = vmul.f32 %v2344, %v2399
      %v2442 = vmul.f32 %v2345, %v2399
      %v2443 = vmul.f32 %v2346, %v2404
      %v2444 = vmul.f32 %v2347, %v2404
      %v2445 = vmul.f32 %v2348, %v2409
      %v2446 = vmul.f32 %v2349, %v2409
      %v2447 = vmul.f32 %v2350, %v2414
      %v2448 = vmul.f32 %v2351, %v2414
      %v2449 = vmul.f32 %v2352, %v2419
      %v2450 = vmul.f32 %v2353, %v2419
      %v2451 = vmul.f32 %v2354, %v2424
      %v2452 = vmul.f32 %v2355, %v2424
      %v2453 = vmul.f32 %v2356, %v2429
      %v2454 = vmul.f32 %v2357, %v2429
      %v2455 = vadd.f32 %v2224, %v2431
      %v2456 = vadd.f32 %v2225, %v2432
      %v2457 = vadd.f32 %v2226, %v2433
      %v2458 = vadd.f32 %v2227, %v2434
      %v2459 = vadd.f32 %v2228, %v2435
      %v2460 = vadd.f32 %v2229, %v2436
      %v2461 = vadd.f32 %v2230, %v2437
      %v2462 = vadd.f32 %v2231, %v2438
      %v2463 = vadd.f32 %v2232, %v2439
      %v2464 = vadd.f32 %v2233, %v2440
      %v2465 = vadd.f32 %v2234, %v2441
      %v2466 = vadd.f32 %v2235, %v2442
      %v2467 = vadd.f32 %v2236, %v2443
      %v2468 = vadd.f32 %v2237, %v2444
      %v2469 = vadd.f32 %v2238, %v2445
      %v2470 = vadd.f32 %v2239, %v2446
      %v2471 = vadd.f32 %v2240, %v2447
      %v2472 = vadd.f32 %v2241, %v2448
      %v2473 = vadd.f32 %v2242, %v2449
      %v2474 = vadd.f32 %v2243, %v2450
      %v2475 = vadd.f32 %v2244, %v2451
      %v2476 = vadd.f32 %v2245, %v2452
      %v2477 = vadd.f32 %v2246, %v2453
      %v2478 = vadd.f32 %v2247, %v2454
      %v2479 = vmul.f32 %v2455, %v2455
      %v2480 = vmul.f32 %v2456, %v2456
      %v2481 = vmul.f32 %v2457, %v2457
      %v2482 = vmul.f32 %v2458, %v2458
      %v2483 = vmul.f32 %v2459, %v2459
      %v2484 = vmul.f32 %v2460, %v2460
      %v2485 = vmul.f32 %v2461, %v2461
      %v2486 = vmul.f32 %v2462, %v2462
      %v2487 = vadd.f32 %v2479, %v2480
      %2488 = vadd.xlane.f32.xlu0 %v2487
      %v2489 = vpop.xlane.xlu0 %2488
      %v2490 = vadd.f32 %v2481, %v2482
      %2491 = vadd.xlane.f32.xlu0 %v2490
      %v2492 = vpop.xlane.xlu0 %2491
      %v2493 = vadd.f32 %v2483, %v2484
      %2494 = vadd.xlane.f32.xlu0 %v2493
      %v2495 = vpop.xlane.xlu0 %2494
      %v2496 = vadd.f32 %v2485, %v2486
      %2497 = vadd.xlane.f32.xlu0 %v2496
      %v2498 = vpop.xlane.xlu0 %2497
      %v2499 = vmax.f32 %v2489, 1e-24
      %v2500 = vmax.f32 %v2492, 1e-24
      %v2501 = vmax.f32 %v2495, 1e-24
      %v2502 = vmax.f32 %v2498, 1e-24
      %v2503 = vrsqrt.pop %v2499
      %v2504 = vrsqrt.pop %v2500
      %v2505 = vrsqrt.pop %v2501
      %v2506 = vrsqrt.pop %v2502
      %v2507 = vmul.f32 %v2463, %v2463
      %v2508 = vmul.f32 %v2464, %v2464
      %v2509 = vmul.f32 %v2465, %v2465
      %v2510 = vmul.f32 %v2466, %v2466
      %v2511 = vmul.f32 %v2467, %v2467
      %v2512 = vmul.f32 %v2468, %v2468
      %v2513 = vmul.f32 %v2469, %v2469
      %v2514 = vmul.f32 %v2470, %v2470
      %v2515 = vadd.f32 %v2507, %v2508
      %2516 = vadd.xlane.f32.xlu0 %v2515
      %v2517 = vpop.xlane.xlu0 %2516
      %v2518 = vadd.f32 %v2509, %v2510
      %2519 = vadd.xlane.f32.xlu0 %v2518
      %v2520 = vpop.xlane.xlu0 %2519
      %v2521 = vadd.f32 %v2511, %v2512
      %2522 = vadd.xlane.f32.xlu0 %v2521
      %v2523 = vpop.xlane.xlu0 %2522
      %v2524 = vadd.f32 %v2513, %v2514
      %2525 = vadd.xlane.f32.xlu0 %v2524
      %v2526 = vpop.xlane.xlu0 %2525
      %v2527 = vmax.f32 %v2517, 1e-24
      %v2528 = vmax.f32 %v2520, 1e-24
      %v2529 = vmax.f32 %v2523, 1e-24
      %v2530 = vmax.f32 %v2526, 1e-24
      %v2531 = vrsqrt.pop %v2527
      %v2532 = vrsqrt.pop %v2528
      %v2533 = vrsqrt.pop %v2529
      %v2534 = vrsqrt.pop %v2530
      %v2535 = vmul.f32 %v2463, %v2531
      %v2536 = vmul.f32 %v2464, %v2531
      %v2537 = vmul.f32 %v2465, %v2532
      %v2538 = vmul.f32 %v2466, %v2532
      %v2539 = vmul.f32 %v2467, %v2533
      %v2540 = vmul.f32 %v2468, %v2533
      %v2541 = vmul.f32 %v2469, %v2534
      %v2542 = vmul.f32 %v2470, %v2534
      %2543 = vmatprep.subr.mxu0 %v2536
      %2544 = vmatpush1.xpose.msra.mxu0 %v2535
      %2545 = vmatprep.subr.mxu0 %v2538
      %2546 = vmatpush1.xpose.msra.mxu0 %v2537
      %2547 = vmatprep.subr.mxu0 %v2540
      %2548 = vmatpush1.xpose.msra.mxu0 %v2539
      %2549 = vmatprep.subr.mxu0 %v2542
      %2550 = vmatpush1.xpose.msra.mxu0 %v2541
      %2551 = vmatprep.subr.mxu0 0.0
      %2552 = vmatpush1.xpose.msra.mxu0 0.0
      %2553 = vmatprep.subr.mxu0 0.0
      %2554 = vmatpush1.xpose.msra.mxu0 0.0
      %2555 = vmatprep.subr.mxu0 0.0
      %2556 = vmatpush1.xpose.msra.mxu0 0.0
      %2557 = vmatprep.subr.mxu0 0.0
      %2558 = vmatpush1.xpose.msra.mxu0 0.0
      %2559 = vmatprep.subr.mxu0 0.0
      %2560 = vmatpush1.xpose.msra.mxu0 0.0
      %2561 = vmatprep.subr.mxu0 0.0
      %2562 = vmatpush1.xpose.msra.mxu0 0.0
      %2563 = vmatprep.subr.mxu0 0.0
      %2564 = vmatpush1.xpose.msra.mxu0 0.0
      %2565 = vmatprep.subr.mxu0 0.0
      %2566 = vmatpush1.xpose.msra.mxu0 0.0
      %2567 = vmatprep.subr.mxu0 0.0
      %2568 = vmatpush1.xpose.msra.mxu0 0.0
      %2569 = vmatprep.subr.mxu0 0.0
      %2570 = vmatpush1.xpose.msra.mxu0 0.0
      %2571 = vmatprep.subr.mxu0 0.0
      %2572 = vmatpush1.xpose.msra.mxu0 0.0
      %2573 = vmatprep.subr.mxu0 0.0
      %2574 = vmatpush1.xpose.msra.mxu0 0.0
      %2575 = vmatprep.subr.mxu0 0.0
      %2576 = vmatpush1.xpose.msra.mxu0 0.0
      %2577 = vmatprep.subr.mxu0 0.0
      %2578 = vmatpush1.xpose.msra.mxu0 0.0
      %2579 = vmatprep.subr.mxu0 0.0
      %2580 = vmatpush1.xpose.msra.mxu0 0.0
      %2581 = vmatprep.subr.mxu0 0.0
      %2582 = vmatpush1.xpose.msra.mxu0 0.0
      %2583 = vmatprep.subr.mxu0 0.0
      %2584 = vmatpush1.xpose.msra.mxu0 0.0
      %2585 = vmatprep.subr.mxu0 0.0
      %2586 = vmatpush1.xpose.msra.mxu0 0.0
      %2587 = vmatprep.subr.mxu0 0.0
      %2588 = vmatpush1.xpose.msra.mxu0 0.0
      %2589 = vmatprep.subr.mxu0 0.0
      %2590 = vmatpush1.xpose.msra.mxu0 0.0
      %2591 = vmatprep.subr.mxu0 0.0
      %2592 = vmatpush1.xpose.msra.mxu0 0.0
      %2593 = vmatprep.subr.mxu0 0.0
      %2594 = vmatpush1.xpose.msra.mxu0 0.0
      %2595 = vmatprep.subr.mxu0 0.0
      %2596 = vmatpush1.xpose.msra.mxu0 0.0
      %2597 = vmatprep.subr.mxu0 0.0
      %2598 = vmatpush1.xpose.msra.mxu0 0.0
      %2599 = vmatprep.subr.mxu0 0.0
      %2600 = vmatpush1.xpose.msra.mxu0 0.0
      %2601 = vmatprep.subr.mxu0 0.0
      %2602 = vmatpush1.xpose.msra.mxu0 0.0
      %2603 = vmatprep.subr.mxu0 0.0
      %2604 = vmatpush1.xpose.msra.mxu0 0.0
      %2605 = vmatprep.subr.mxu0 0.0
      %2606 = vmatpush1.xpose.msra.mxu0 0.0
      %2607 = vmatprep.mubr.f32.mxu0 %v2456
      %2608 = vmatmul.mubr.f32.gmra.mrb[0].mxu0 %v2455
      %v2609 = vpop.f32.mrb[0].mxu0
      %v2610 = vadd.f32 0.0, %v2609
      %v2611 = vpop.f32.mrb[0].mxu0
      %2612 = vmatprep.mubr.f32.mxu0 %v2458
      %2613 = vmatmul.mubr.f32.gmra.mrb[0].mxu0 %v2457
      %v2614 = vpop.f32.mrb[0].mxu0
      %v2615 = vadd.f32 0.0, %v2614
      %v2616 = vpop.f32.mrb[0].mxu0
      %2617 = vmatprep.mubr.f32.mxu0 %v2460
      %2618 = vmatmul.mubr.f32.gmra.mrb[0].mxu0 %v2459
      %v2619 = vpop.f32.mrb[0].mxu0
      %v2620 = vadd.f32 0.0, %v2619
      %v2621 = vpop.f32.mrb[0].mxu0
      %2622 = vmatprep.mubr.f32.mxu0 %v2462
      %2623 = vmatmul.mubr.f32.gmra.mrb[0].mxu0 %v2461
      %v2624 = vpop.f32.mrb[0].mxu0
      %v2625 = vadd.f32 0.0, %v2624
      %v2626 = vpop.f32.mrb[0].mxu0
      %2627 = vdwg.mxu0
      %v2628 = vld [vmem:[%s4] sm:$0xff]
      %v2629 = vld [vmem:[%s4 + $0x8] sm:$0xff]
      %v2630 = vld [vmem:[%s4 + $0x10] sm:$0xff]
      %v2631 = vld [vmem:[%s4 + $0x18] sm:$0xff]
      %v2632 = vmul.f32 %v2503, %v2628
      %v2633 = vmul.f32 %v2504, %v2629
      %v2634 = vmul.f32 %v2505, %v2630
      %v2635 = vmul.f32 %v2506, %v2631
      %2637 = vset.pattern.permute.xlu0 0
      %2638 = vperm.xlu0 %2637, %v2632
      %v2639 = vpop.permute.xlu0 %2638
      %2642 = vset.pattern.permute.xlu0 0
      %2643 = vperm.xlu0 %2642, %v2633
      %v2644 = vpop.permute.xlu0 %2643
      %2647 = vset.pattern.permute.xlu0 0
      %2648 = vperm.xlu0 %2647, %v2634
      %v2649 = vpop.permute.xlu0 %2648
      %2652 = vset.pattern.permute.xlu0 0
      %2653 = vperm.xlu0 %2652, %v2635
      %v2654 = vpop.permute.xlu0 %2653
      %v2656 = vmul.f32 %v2610, %v2639
      %v2657 = vmul.f32 %v2615, %v2644
      %v2658 = vmul.f32 %v2620, %v2649
      %v2659 = vmul.f32 %v2625, %v2654
      %v2660 = vld [vmem:[%s5] sm:$0xff]
      %v2661 = vld [vmem:[%s5 + $0x8] sm:$0xff]
      %v2662 = vld [vmem:[%s5 + $0x10] sm:$0xff]
      %v2663 = vld [vmem:[%s5 + $0x18] sm:$0xff]
      %v2664 = vadd.f32 %v2656, %v2660
      %v2665 = vadd.f32 %v2657, %v2661
      %v2666 = vadd.f32 %v2658, %v2662
      %v2667 = vadd.f32 %v2659, %v2663
      %v2668 = vsel %vm299, %v2664, -inf
      %2669 = vmax.xlane.f32.xlu0 %v2668
      %v2670 = vpop.xlane.xlu0 %2669
      %v2671 = vsel %vm299, %v2665, -inf
      %2672 = vmax.xlane.f32.xlu0 %v2671
      %v2673 = vpop.xlane.xlu0 %2672
      %v2674 = vsel %vm299, %v2666, -inf
      %2675 = vmax.xlane.f32.xlu0 %v2674
      %v2676 = vpop.xlane.xlu0 %2675
      %v2677 = vsel %vm299, %v2667, -inf
      %2678 = vmax.xlane.f32.xlu0 %v2677
      %v2679 = vpop.xlane.xlu0 %2678
      %v2680 = vsub.f32 %v2664, %v2670
      %v2681 = vsub.f32 %v2665, %v2673
      %v2682 = vsub.f32 %v2666, %v2676
      %v2683 = vsub.f32 %v2667, %v2679
      %v2684 = vmul.f32 %v2680, 1.442695
      %v2685 = vpow.pop %v2684
      %v2686 = vmul.f32 %v2681, 1.442695
      %v2687 = vpow.pop %v2686
      %v2688 = vmul.f32 %v2682, 1.442695
      %v2689 = vpow.pop %v2688
      %v2690 = vmul.f32 %v2683, 1.442695
      %v2691 = vpow.pop %v2690
      %v2692 = vsel %vm299, %v2685, 0.0
      %2693 = vadd.xlane.f32.xlu0 %v2692
      %v2694 = vpop.xlane.xlu0 %2693
      %v2695 = vsel %vm299, %v2687, 0.0
      %2696 = vadd.xlane.f32.xlu0 %v2695
      %v2697 = vpop.xlane.xlu0 %2696
      %v2698 = vsel %vm299, %v2689, 0.0
      %2699 = vadd.xlane.f32.xlu0 %v2698
      %v2700 = vpop.xlane.xlu0 %2699
      %v2701 = vsel %vm299, %v2691, 0.0
      %2702 = vadd.xlane.f32.xlu0 %v2701
      %v2703 = vpop.xlane.xlu0 %2702
      %v2704 = vrcp.pop %v2694
      %v2705 = vmul.f32 %v2685, %v2704
      %v2706 = vrcp.pop %v2697
      %v2707 = vmul.f32 %v2687, %v2706
      %v2708 = vrcp.pop %v2700
      %v2709 = vmul.f32 %v2689, %v2708
      %v2710 = vrcp.pop %v2703
      %v2711 = vmul.f32 %v2691, %v2710
      %v2713 = vsel %vm299, %v2705, 0
      %v2716 = vsel %vm299, %v2707, 0
      %v2719 = vsel %vm299, %v2709, 0
      %v2722 = vsel %vm299, %v2711, 0
      %2724 = vmatprep.subr.mxu0 %v2472
      %2725 = vmatpush1.msra.mxu0 %v2471
      %2726 = vmatprep.subr.mxu0 %v2474
      %2727 = vmatpush1.msra.mxu0 %v2473
      %2728 = vmatprep.subr.mxu0 %v2476
      %2729 = vmatpush1.msra.mxu0 %v2475
      %2730 = vmatprep.subr.mxu0 %v2478
      %2731 = vmatpush1.msra.mxu0 %v2477
      %2732 = vmatprep.subr.mxu0 0.0
      %2733 = vmatpush1.msra.mxu0 0.0
      %2734 = vmatprep.subr.mxu0 0.0
      %2735 = vmatpush1.msra.mxu0 0.0
      %2736 = vmatprep.subr.mxu0 0.0
      %2737 = vmatpush1.msra.mxu0 0.0
      %2738 = vmatprep.subr.mxu0 0.0
      %2739 = vmatpush1.msra.mxu0 0.0
      %2740 = vmatprep.subr.mxu0 0.0
      %2741 = vmatpush1.msra.mxu0 0.0
      %2742 = vmatprep.subr.mxu0 0.0
      %2743 = vmatpush1.msra.mxu0 0.0
      %2744 = vmatprep.subr.mxu0 0.0
      %2745 = vmatpush1.msra.mxu0 0.0
      %2746 = vmatprep.subr.mxu0 0.0
      %2747 = vmatpush1.msra.mxu0 0.0
      %2748 = vmatprep.subr.mxu0 0.0
      %2749 = vmatpush1.msra.mxu0 0.0
      %2750 = vmatprep.subr.mxu0 0.0
      %2751 = vmatpush1.msra.mxu0 0.0
      %2752 = vmatprep.subr.mxu0 0.0
      %2753 = vmatpush1.msra.mxu0 0.0
      %2754 = vmatprep.subr.mxu0 0.0
      %2755 = vmatpush1.msra.mxu0 0.0
      %2756 = vmatprep.subr.mxu0 0.0
      %2757 = vmatpush1.msra.mxu0 0.0
      %2758 = vmatprep.subr.mxu0 0.0
      %2759 = vmatpush1.msra.mxu0 0.0
      %2760 = vmatprep.subr.mxu0 0.0
      %2761 = vmatpush1.msra.mxu0 0.0
      %2762 = vmatprep.subr.mxu0 0.0
      %2763 = vmatpush1.msra.mxu0 0.0
      %2764 = vmatprep.subr.mxu0 0.0
      %2765 = vmatpush1.msra.mxu0 0.0
      %2766 = vmatprep.subr.mxu0 0.0
      %2767 = vmatpush1.msra.mxu0 0.0
      %2768 = vmatprep.subr.mxu0 0.0
      %2769 = vmatpush1.msra.mxu0 0.0
      %2770 = vmatprep.subr.mxu0 0.0
      %2771 = vmatpush1.msra.mxu0 0.0
      %2772 = vmatprep.subr.mxu0 0.0
      %2773 = vmatpush1.msra.mxu0 0.0
      %2774 = vmatprep.subr.mxu0 0.0
      %2775 = vmatpush1.msra.mxu0 0.0
      %2776 = vmatprep.subr.mxu0 0.0
      %2777 = vmatpush1.msra.mxu0 0.0
      %2778 = vmatprep.subr.mxu0 0.0
      %2779 = vmatpush1.msra.mxu0 0.0
      %2780 = vmatprep.subr.mxu0 0.0
      %2781 = vmatpush1.msra.mxu0 0.0
      %2782 = vmatprep.subr.mxu0 0.0
      %2783 = vmatpush1.msra.mxu0 0.0
      %2784 = vmatprep.subr.mxu0 0.0
      %2785 = vmatpush1.msra.mxu0 0.0
      %2786 = vmatprep.subr.mxu0 0.0
      %2787 = vmatpush1.msra.mxu0 0.0
      %2788 = vmatprep.mubr.f32.mxu0 0.0
      %2789 = vmatmul.mubr.f32.gmra.mrb[0].mxu0 %v2713
      %v2790 = vpop.f32.mrb[0].mxu0
      %v2791 = vadd.f32 0.0, %v2790
      %v2792 = vpop.f32.mrb[0].mxu0
      %v2793 = vadd.f32 0.0, %v2792
      %2794 = vmatprep.mubr.f32.mxu0 0.0
      %2795 = vmatmul.mubr.f32.gmra.mrb[0].mxu0 %v2716
      %v2796 = vpop.f32.mrb[0].mxu0
      %v2797 = vadd.f32 0.0, %v2796
      %v2798 = vpop.f32.mrb[0].mxu0
      %v2799 = vadd.f32 0.0, %v2798
      %2800 = vmatprep.mubr.f32.mxu0 0.0
      %2801 = vmatmul.mubr.f32.gmra.mrb[0].mxu0 %v2719
      %v2802 = vpop.f32.mrb[0].mxu0
      %v2803 = vadd.f32 0.0, %v2802
      %v2804 = vpop.f32.mrb[0].mxu0
      %v2805 = vadd.f32 0.0, %v2804
      %2806 = vmatprep.mubr.f32.mxu0 0.0
      %2807 = vmatmul.mubr.f32.gmra.mrb[0].mxu0 %v2722
      %v2808 = vpop.f32.mrb[0].mxu0
      %v2809 = vadd.f32 0.0, %v2808
      %v2810 = vpop.f32.mrb[0].mxu0
      %v2811 = vadd.f32 0.0, %v2810
      %2812 = vdwg.mxu0
      %v2813 = vld [vmem:[%s6] sm:$0xff]
      %v2814 = vld [vmem:[%s6 + $0x8] sm:$0xff]
      %v2815 = vld [vmem:[%s6 + $0x10] sm:$0xff]
      %v2816 = vld [vmem:[%s6 + $0x18] sm:$0xff]
      %v2818 = vsel %vm299, %v2813, 0
      %v2821 = vsel %vm299, %v2814, 0
      %v2824 = vsel %vm299, %v2815, 0
      %v2827 = vsel %vm299, %v2816, 0
      %2829 = vmatprep.subr.mxu0 %v2793
      %2830 = vmatpush1.msra.mxu0 %v2791
      %2831 = vmatprep.subr.mxu0 %v2799
      %2832 = vmatpush1.msra.mxu0 %v2797
      %2833 = vmatprep.subr.mxu0 %v2805
      %2834 = vmatpush1.msra.mxu0 %v2803
      %2835 = vmatprep.subr.mxu0 %v2811
      %2836 = vmatpush1.msra.mxu0 %v2809
      %2837 = vmatprep.subr.mxu0 0.0
      %2838 = vmatpush1.msra.mxu0 0.0
      %2839 = vmatprep.subr.mxu0 0.0
      %2840 = vmatpush1.msra.mxu0 0.0
      %2841 = vmatprep.subr.mxu0 0.0
      %2842 = vmatpush1.msra.mxu0 0.0
      %2843 = vmatprep.subr.mxu0 0.0
      %2844 = vmatpush1.msra.mxu0 0.0
      %2845 = vmatprep.subr.mxu0 0.0
      %2846 = vmatpush1.msra.mxu0 0.0
      %2847 = vmatprep.subr.mxu0 0.0
      %2848 = vmatpush1.msra.mxu0 0.0
      %2849 = vmatprep.subr.mxu0 0.0
      %2850 = vmatpush1.msra.mxu0 0.0
      %2851 = vmatprep.subr.mxu0 0.0
      %2852 = vmatpush1.msra.mxu0 0.0
      %2853 = vmatprep.subr.mxu0 0.0
      %2854 = vmatpush1.msra.mxu0 0.0
      %2855 = vmatprep.subr.mxu0 0.0
      %2856 = vmatpush1.msra.mxu0 0.0
      %2857 = vmatprep.subr.mxu0 0.0
      %2858 = vmatpush1.msra.mxu0 0.0
      %2859 = vmatprep.subr.mxu0 0.0
      %2860 = vmatpush1.msra.mxu0 0.0
      %2861 = vmatprep.subr.mxu0 0.0
      %2862 = vmatpush1.msra.mxu0 0.0
      %2863 = vmatprep.subr.mxu0 0.0
      %2864 = vmatpush1.msra.mxu0 0.0
      %2865 = vmatprep.subr.mxu0 0.0
      %2866 = vmatpush1.msra.mxu0 0.0
      %2867 = vmatprep.subr.mxu0 0.0
      %2868 = vmatpush1.msra.mxu0 0.0
      %2869 = vmatprep.subr.mxu0 0.0
      %2870 = vmatpush1.msra.mxu0 0.0
      %2871 = vmatprep.subr.mxu0 0.0
      %2872 = vmatpush1.msra.mxu0 0.0
      %2873 = vmatprep.subr.mxu0 0.0
      %2874 = vmatpush1.msra.mxu0 0.0
      %2875 = vmatprep.subr.mxu0 0.0
      %2876 = vmatpush1.msra.mxu0 0.0
      %2877 = vmatprep.subr.mxu0 0.0
      %2878 = vmatpush1.msra.mxu0 0.0
      %2879 = vmatprep.subr.mxu0 0.0
      %2880 = vmatpush1.msra.mxu0 0.0
      %2881 = vmatprep.subr.mxu0 0.0
      %2882 = vmatpush1.msra.mxu0 0.0
      %2883 = vmatprep.subr.mxu0 0.0
      %2884 = vmatpush1.msra.mxu0 0.0
      %2885 = vmatprep.subr.mxu0 0.0
      %2886 = vmatpush1.msra.mxu0 0.0
      %2887 = vmatprep.subr.mxu0 0.0
      %2888 = vmatpush1.msra.mxu0 0.0
      %2889 = vmatprep.subr.mxu0 0.0
      %2890 = vmatpush1.msra.mxu0 0.0
      %2891 = vmatprep.subr.mxu0 0.0
      %2892 = vmatpush1.msra.mxu0 0.0
      %2893 = vmatprep.mubr.f32.mxu0 0.0
      %2894 = vmatmul.mubr.f32.gmra.mrb[0].mxu0 %v2818
      %v2895 = vpop.f32.mrb[0].mxu0
      %v2896 = vadd.f32 0.0, %v2895
      %v2897 = vpop.f32.mrb[0].mxu0
      %v2898 = vadd.f32 0.0, %v2897
      %2899 = vmatprep.mubr.f32.mxu0 0.0
      %2900 = vmatmul.mubr.f32.gmra.mrb[0].mxu0 %v2821
      %v2901 = vpop.f32.mrb[0].mxu0
      %v2902 = vadd.f32 0.0, %v2901
      %v2903 = vpop.f32.mrb[0].mxu0
      %v2904 = vadd.f32 0.0, %v2903
      %2905 = vmatprep.mubr.f32.mxu0 0.0
      %2906 = vmatmul.mubr.f32.gmra.mrb[0].mxu0 %v2824
      %v2907 = vpop.f32.mrb[0].mxu0
      %v2908 = vadd.f32 0.0, %v2907
      %v2909 = vpop.f32.mrb[0].mxu0
      %v2910 = vadd.f32 0.0, %v2909
      %2911 = vmatprep.mubr.f32.mxu0 0.0
      %2912 = vmatmul.mubr.f32.gmra.mrb[0].mxu0 %v2827
      %v2913 = vpop.f32.mrb[0].mxu0
      %v2914 = vadd.f32 0.0, %v2913
      %v2915 = vpop.f32.mrb[0].mxu0
      %v2916 = vadd.f32 0.0, %v2915
      %2917 = vdwg.mxu0
      %2918 = vst [vmem:[%s278] sm:$0xff] %v2896
      %2919 = vst [vmem:[%s278 + $0x8] sm:$0xff] %v2898
      %2920 = vst [vmem:[%s278 + $0x10] sm:$0xff] %v2902
      %2921 = vst [vmem:[%s278 + $0x18] sm:$0xff] %v2904
      %2922 = vst [vmem:[%s278 + $0x20] sm:$0xff] %v2908
      %2923 = vst [vmem:[%s278 + $0x28] sm:$0xff] %v2910
      %2924 = vst [vmem:[%s278 + $0x30] sm:$0xff] %v2914
      %2925 = vst [vmem:[%s278 + $0x38] sm:$0xff] %v2916
      %p2926 = scmp.lt.s32.totalorder %s18, 1
      %s2927 = scalar_select %p2926, %s18, 1
      %s2928 = smul.addr %s2927, 8
      %s2929 = smul.addr %s2928, 8
      %s2930 = scalar_lea.vmem %s7, %s2929
      // Predicated region
      $region49: #{attention_forward.1} parent=47 // pred_check
        %p2931 = pneg %p188
      $region50: #{attention_forward.1} parent=47 // pred_check_branch
        %2933 = sbr.rel (%p2931) target = $region52
      $region51: #{attention_forward.1} parent=47 // pred_region
        _
      $region52: #{attention_forward.1} parent=47 // pred_fallthru
        _
    $region48: #{attention_forward.1} parent=5 // pred_fallthru
      _
    %p2934 = scmp.le.s32.totalorder 2, %s13
    // Predicated region
    $region53: #{attention_forward.1} parent=5 // pred_check
      %p2935 = pneg %p2934
    $region54: #{attention_forward.1} parent=5 // pred_check_branch
      %2937 = sbr.rel (%p2935) target = $region56
    $region55: #{attention_forward.1} parent=5 // pred_region
      %s2938 = ssub.s32 %s13, 2
      // Predicated region
      $region57: #{attention_forward.1} parent=55 // pred_check
        %p2939 = pneg %p194
      $region58: #{attention_forward.1} parent=55 // pred_check_branch
        %2941 = sbr.rel (%p2939) target = $region60
      $region59: #{attention_forward.1} parent=55 // pred_region
        %p2942 = scmp.lt.s32.totalorder %s19, 1
        %s2943 = scalar_select %p2942, %s19, 1
        %s2944 = smul.addr %s2943, 8
        %s2945 = smul.addr %s2944, 8
        %s2946 = scalar_lea.vmem %s7, %s2945
      $region60: #{attention_forward.1} parent=55 // pred_fallthru
        _
    $region56: #{attention_forward.1} parent=5 // pred_fallthru
      _
  $region6: #{attention_forward.1} parent=0 // loop_footer
    %s17 = sadd.s32 1, %s13
  $region7: #{attention_forward.1} parent=0 // loop_footer_branch
    %12 = sbr.rel target = $region3
  $region8: #{attention_forward.1} parent=0 // loop_exit
    _

</llo_original>
